<compile_context>
chip_gen: v7x
topology: tpu7x:2x2x1
jax: 0.10.0
libtpu: 0.0.40
codegen_flags: <defaults>
</compile_context>

<pallas_src>
import math

import jax
import jax.numpy as jnp
from jax.experimental import pallas as pl
from jax.experimental.pallas import tpu as pltpu

# ----------------------------- synthetic config -----------------------------
VOCAB = 64
N_LAYER = 2
N_HEAD = 2
D = 32
D_HEAD = D // N_HEAD
D_FF = 4 * D
LATENT = 8
MAX_POS = 64
NULL_IDX = 0
START_IDX = 1
END_IDX = 2
ADD_START_TOKEN = False
LN_EPS = 1e-5
NEG_INF = -1e9


# ------------------------------ kernel helpers ------------------------------
def _layer_norm(x, g, b):
    mu = jnp.mean(x, axis=-1, keepdims=True)
    var = jnp.mean((x - mu) ** 2, axis=-1, keepdims=True)
    return (x - mu) * jax.lax.rsqrt(var + LN_EPS) * g + b


def _gelu_new(x):
    # GPT-2 "gelu_new" (tanh approximation)
    return 0.5 * x * (1.0 + jnp.tanh(0.7978845608028654 * (x + 0.044715 * x * x * x)))


# ------------------------------- fused kernel --------------------------------
def block_kernel(x_in_ref, kbias_ref,
                 ln1g_ref, ln1b_ref, wqkv_ref, bqkv_ref, wo_ref, bo_ref,
                 ln2g_ref, ln2b_ref, wfc_ref, bfc_ref, wpr_ref, bpr_ref,
                 lnfg_ref, lnfb_ref,
                 h_ref, k_ref, v_ref,
                 x_sc, bias_sc):
    """Grid step (b, l): one pre-LN GPT-2 block for batch element b, layer l."""
    l = pl.program_id(1)
    T = x_in_ref.shape[1]

    # Layer 0: seed the residual stream and build the additive attention bias
    # (causal AND key-not-padding) once per batch element.
    @pl.when(l == 0)
    def _():
        x_sc[...] = x_in_ref[0]
        row = jax.lax.broadcasted_iota(jnp.int32, (T, T), 0)
        col = jax.lax.broadcasted_iota(jnp.int32, (T, T), 1)
        bias_sc[...] = jnp.where(col <= row, 0.0, NEG_INF) + kbias_ref[0]

    x = x_sc[...]                                                  # (T, D) f32

    # --- attention (pre-LN); 1/sqrt(D_HEAD) is folded into w_qkv / b_qkv ---
    h = _layer_norm(x, ln1g_ref[0], ln1b_ref[0])
    qkv = jnp.dot(h.astype(jnp.bfloat16), wqkv_ref[0],
                  preferred_element_type=jnp.float32) + bqkv_ref[0]
    q = qkv[:, 0:D]
    k = qkv[:, D:2 * D]
    v = qkv[:, 2 * D:3 * D]

    # lane-dense K/V "present" emit: full (T, D) f32 slabs (head split in glue).
    k_ref[0, 0] = k
    v_ref[0, 0] = v

    # TODO(synk): Mosaic dot_general wants leading batch dims, so the head
    # relayouts remain; switch to 'qhd,khd->hqk' / 'hqk,khd->qhd' einsums once
    # non-leading batch dims lower.
    qh = jnp.swapaxes(q.reshape(T, N_HEAD, D_HEAD), 0, 1).astype(jnp.bfloat16)
    kh = jnp.swapaxes(k.reshape(T, N_HEAD, D_HEAD), 0, 1).astype(jnp.bfloat16)
    vh = jnp.swapaxes(v.reshape(T, N_HEAD, D_HEAD), 0, 1).astype(jnp.bfloat16)

    # TODO(synk): at realistic T, tile queries (>=128 rows) and use flash-style
    # online-softmax key tiling so the (H, T, T) scores never live whole in VMEM.
    scores = jnp.einsum('hqd,hkd->hqk', qh, kh,
                        preferred_element_type=jnp.float32) + bias_sc[...][None]
    scores = scores - jnp.max(scores, axis=-1, keepdims=True)      # f32 softmax
    p = jnp.exp(scores)
    p = p * pl.reciprocal(jnp.sum(p, axis=-1, keepdims=True), approx=True)
    ctx = jnp.einsum('hqk,hkd->hqd', p.astype(jnp.bfloat16), vh,
                     preferred_element_type=jnp.float32)           # (H, T, Dh)
    attn = jnp.swapaxes(ctx, 0, 1).reshape(T, D)
    attn = jnp.dot(attn.astype(jnp.bfloat16), wo_ref[0],
                   preferred_element_type=jnp.float32) + bo_ref[0]
    x = x + attn

    # --- MLP ---
    h2 = _layer_norm(x, ln2g_ref[0], ln2b_ref[0])
    ff = _gelu_new(jnp.dot(h2.astype(jnp.bfloat16), wfc_ref[0],
                           preferred_element_type=jnp.float32) + bfc_ref[0])
    ff = jnp.dot(ff.astype(jnp.bfloat16), wpr_ref[0],
                 preferred_element_type=jnp.float32) + bpr_ref[0]
    x = x + ff
    x_sc[...] = x

    # Last layer: final LayerNorm -> transformer_outputs[0]
    @pl.when(l == pl.num_programs(1) - 1)
    def _():
        h_ref[0] = _layer_norm(x, lnfg_ref[...], lnfb_ref[...])


# ------------------------------- spec helpers --------------------------------
def _batch_spec(shape):
    nd = len(shape)
    return pl.BlockSpec((1,) + tuple(shape[1:]), lambda b, l: (b,) + (0,) * (nd - 1))


def _layer_spec(shape):
    nd = len(shape)
    return pl.BlockSpec((1,) + tuple(shape[1:]), lambda b, l: (l,) + (0,) * (nd - 1))


def _rep_spec(shape):
    nd = len(shape)
    return pl.BlockSpec(tuple(shape), lambda b, l: (0,) * nd)


_WEIGHT_NAMES = ('ln1_g', 'ln1_b', 'w_qkv', 'b_qkv', 'w_o', 'b_o',
                 'ln2_g', 'ln2_b', 'w_fc', 'b_fc', 'w_pr', 'b_pr',
                 'lnf_g', 'lnf_b')


def _vmem_limit_bytes(T):
    f32, bf16 = 4, 2
    act_in = T * D * f32 + T * f32                                   # x_emb + key bias blocks
    w_layer = ((D * 3 * D + D * D + D * D_FF + D_FF * D) * bf16      # bf16 matmul weights
               + (3 * D + D + D_FF + D) * f32 + 4 * D * f32)         # f32 biases + LN params
    w_final = 2 * D * f32
    outs = 3 * T * D * f32                                           # h + k + v blocks
    scratch = T * D * f32 + T * T * f32
    need = 2 * (act_in + w_layer + w_final + outs) + scratch         # double-buffered
    # generous headroom but capped v7x-safe (64 MiB physical per TC)
    return int(min(48 * 2 ** 20, max(8 * 2 ** 20, 4 * need)))


def _cost_estimate(B, T):
    mm = (2 * T * D * 3 * D            # qkv projection
          + 2 * T * T * D * 2          # scores + context
          + 2 * T * D * D              # output projection
          + 2 * T * D * D_FF * 2)      # MLP
    flops = B * N_LAYER * mm
    transc = B * N_LAYER * (N_HEAD * T * T + T * D_FF)               # exp + tanh
    w_bytes = N_LAYER * ((D * 3 * D + D * D + 2 * D * D_FF) * 2
                         + (3 * D + 2 * D + D_FF) * 4 + 4 * D * 4) + 2 * D * 4
    bytes_accessed = B * w_bytes + B * (T * D * 4 + T * 4) + 3 * B * T * D * 4
    return pl.CostEstimate(flops=int(flops), transcendentals=int(transc),
                           bytes_accessed=int(bytes_accessed))


def _stack_call(x_emb, key_bias, params):
    B, T, _ = x_emb.shape
    weights = [params[n] for n in _WEIGHT_NAMES]
    in_specs = [_batch_spec(x_emb.shape), _batch_spec(key_bias.shape)]
    for name, w in zip(_WEIGHT_NAMES, weights):
        in_specs.append(_rep_spec(w.shape) if name.startswith('lnf')
                        else _layer_spec(w.shape))
    kv_shape = (B, N_LAYER, T, D)
    # TODO(synk): for B == 1 decode on v7x, add a second parallel grid axis
    # (head / query-tile split) so both TensorCores get work.
    return pl.pallas_call(
        block_kernel,
        out_shape=(jax.ShapeDtypeStruct((B, T, D), jnp.float32),
                   jax.ShapeDtypeStruct(kv_shape, jnp.float32),
                   jax.ShapeDtypeStruct(kv_shape, jnp.float32)),
        grid=(B, N_LAYER),
        in_specs=in_specs,
        out_specs=[
            pl.BlockSpec((1, T, D), lambda b, l: (b, 0, 0)),
            pl.BlockSpec((1, 1, T, D), lambda b, l: (b, l, 0, 0)),
            pl.BlockSpec((1, 1, T, D), lambda b, l: (b, l, 0, 0)),
        ],
        scratch_shapes=[pltpu.VMEM((T, D), jnp.float32),     # residual stream
                        pltpu.VMEM((T, T), jnp.float32)],    # additive attn bias
        compiler_params=pltpu.CompilerParams(
            dimension_semantics=("parallel", "arbitrary"),
            vmem_limit_bytes=_vmem_limit_bytes(T)),
        cost_estimate=_cost_estimate(B, T),
    )(x_emb, key_bias, *weights)


# ------------------------------ parameter init -------------------------------
def init_params(key):
    keys = jax.random.split(key, 8)
    it = iter(keys)
    s = 0.02

    def rnd(shape):
        return jax.random.normal(next(it), shape, jnp.float32) * s

    return {
        'wte': rnd((VOCAB, D)),
        'wpe': rnd((MAX_POS, D)),
        'w_cl': rnd((LATENT, D)),
        'b_cl': jnp.zeros((1, D), jnp.float32),
        'lnf_g': jnp.ones((1, D), jnp.float32),
        'lnf_b': jnp.zeros((1, D), jnp.float32),
        # per-layer params stacked on a leading layer axis
        'ln1_g': jnp.ones((N_LAYER, 1, D), jnp.float32),
        'ln1_b': jnp.zeros((N_LAYER, 1, D), jnp.float32),
        'w_qkv': rnd((N_LAYER, D, 3 * D)),
        'b_qkv': jnp.zeros((N_LAYER, 1, 3 * D), jnp.float32),
        'w_o': rnd((N_LAYER, D, D)),
        'b_o': jnp.zeros((N_LAYER, 1, D), jnp.float32),
        'ln2_g': jnp.ones((N_LAYER, 1, D), jnp.float32),
        'ln2_b': jnp.zeros((N_LAYER, 1, D), jnp.float32),
        'w_fc': rnd((N_LAYER, D, D_FF)),
        'b_fc': jnp.zeros((N_LAYER, 1, D_FF), jnp.float32),
        'w_pr': rnd((N_LAYER, D_FF, D)),
        'b_pr': jnp.zeros((N_LAYER, 1, D), jnp.float32),
    }


def prepare_params(params):
    """One-time host transform: fold 1/sqrt(D_HEAD) into the q columns and cast
    the MXU weights to bf16 (LN / bias params stay f32)."""
    p = dict(params)
    scale = 1.0 / math.sqrt(D_HEAD)
    p['w_qkv'] = p['w_qkv'].at[:, :, 0:D].multiply(scale).astype(jnp.bfloat16)
    p['b_qkv'] = p['b_qkv'].at[:, :, 0:D].multiply(scale)
    for name in ('w_o', 'w_fc', 'w_pr'):
        p[name] = p[name].astype(jnp.bfloat16)
    return p


# ------------------------------- forward (glue) -------------------------------
def gpt2_time_decoder_forward(params, input_ids, encoder_state, cl_feats):
    """Mirrors GPT2TimeDecoder.forward for incr_state=None."""
    B, L_in = input_ids.shape

    # host-side data-dependent special case (concrete arrays, not jitted)
    if (not ADD_START_TOKEN) and L_in == 1 and int(input_ids[0, 0]) == START_IDX:
        model_input = encoder_state
    else:
        model_input = jnp.concatenate([encoder_state, input_ids], axis=-1)

    attention_mask = model_input != NULL_IDX                                    # (B, T) bool
    position_ids = jnp.maximum(jnp.cumsum(attention_mask.astype(jnp.int32), axis=-1) - 1, 0)
    model_input = jnp.maximum(model_input, 0)
    T = model_input.shape[1]

    # embedding gathers + latent projection, pre-summed into one activation
    # stream (glue; XLA fuses these into the gather epilogue)
    tok_emb = jnp.take(params['wte'], model_input, axis=0)                       # (B, T, D)
    pos_emb = jnp.take(params['wpe'], position_ids, axis=0)                      # (B, T, D)
    cl_proj = (cl_feats.astype(jnp.float32) @ params['w_cl']
               + params['b_cl']).reshape(B, 1, D)                                # (B, 1, D)
    x_emb = tok_emb + pos_emb + cl_proj                                          # (B, T, D)
    key_bias = jnp.where(attention_mask, 0.0, NEG_INF).astype(jnp.float32)[:, None, :]  # (B, 1, T)

    # --- fused Pallas hot path: all blocks + final LN, layer-streamed weights ---
    hidden_states, k_all, v_all = _stack_call(x_emb, key_bias, params)

    # split lane-dense (B, L, T, D) K/V into the HF "present" layout (glue)
    k_all = jnp.transpose(k_all.reshape(B, N_LAYER, T, N_HEAD, D_HEAD), (0, 1, 3, 2, 4))
    v_all = jnp.transpose(v_all.reshape(B, N_LAYER, T, N_HEAD, D_HEAD), (0, 1, 3, 2, 4))
    new_incr_state = tuple((k_all[:, l], v_all[:, l]) for l in range(N_LAYER))

    # ParlAI output reshuffle (glue)
    start = T - L_in - 1 + int(ADD_START_TOKEN)
    output = hidden_states[:, start:]                                            # (B, L_in+1-add, D)
    lengths = jnp.sum(input_ids != NULL_IDX, axis=-1)                            # (B,)
    rows = jnp.arange(B)
    idx = L_in - lengths
    output = output.at[rows, idx].set(output[rows, 0])

    # TODO(synk): incr_state (past_key_values consumption) branch of forward is
    # not implemented; only the incr_state=None path is reproduced here.
    return output, new_incr_state


# ----------------------------------- main -------------------------------------
if __name__ == "__main__":
    key = jax.random.PRNGKey(0)
    k_par, k_enc, k_in, k_cl = jax.random.split(key, 4)

    params = prepare_params(init_params(k_par))

    B, ENC_LEN, IN_LEN = 2, 10, 6  # total T = 16
    encoder_state = jax.random.randint(k_enc, (B, ENC_LEN), 3, VOCAB, dtype=jnp.int32)
    input_ids = jax.random.randint(k_in, (B, IN_LEN), 3, VOCAB, dtype=jnp.int32)
    # introduce some NULL padding to exercise masks / lengths / position ids
    encoder_state = encoder_state.at[1, -2:].set(NULL_IDX)
    input_ids = input_ids.at[1, -1:].set(NULL_IDX)
    cl_feats = jax.random.normal(k_cl, (B, LATENT), jnp.float32)

    output, new_incr_state = gpt2_time_decoder_forward(
        params, input_ids, encoder_state, cl_feats)

    jax.block_until_ready(output)
    jax.block_until_ready(new_incr_state)
    assert output.shape == (B, IN_LEN + 1 - int(ADD_START_TOKEN), D)
    assert new_incr_state[0][0].shape == (B, N_HEAD, ENC_LEN + IN_LEN, D_HEAD)
    print("KERNEL_OK")
</pallas_src>

<mosaic_0001>
module attributes {stable_mosaic.version = 11 : i64} {
  func.func @block_kernel(%arg0: i32, %arg1: i32, %arg2: memref<1x16x32xf32, #tpu.memory_space<vmem>>, %arg3: memref<1x1x16xf32, #tpu.memory_space<vmem>>, %arg4: memref<1x1x32xf32, #tpu.memory_space<vmem>>, %arg5: memref<1x1x32xf32, #tpu.memory_space<vmem>>, %arg6: memref<1x32x96xbf16, #tpu.memory_space<vmem>>, %arg7: memref<1x1x96xf32, #tpu.memory_space<vmem>>, %arg8: memref<1x32x32xbf16, #tpu.memory_space<vmem>>, %arg9: memref<1x1x32xf32, #tpu.memory_space<vmem>>, %arg10: memref<1x1x32xf32, #tpu.memory_space<vmem>>, %arg11: memref<1x1x32xf32, #tpu.memory_space<vmem>>, %arg12: memref<1x32x128xbf16, #tpu.memory_space<vmem>>, %arg13: memref<1x1x128xf32, #tpu.memory_space<vmem>>, %arg14: memref<1x128x32xbf16, #tpu.memory_space<vmem>>, %arg15: memref<1x1x32xf32, #tpu.memory_space<vmem>>, %arg16: memref<1x32xf32, #tpu.memory_space<vmem>>, %arg17: memref<1x32xf32, #tpu.memory_space<vmem>>, %arg18: memref<1x16x32xf32, #tpu.memory_space<vmem>>, %arg19: memref<1x1x16x32xf32, #tpu.memory_space<vmem>>, %arg20: memref<1x1x16x32xf32, #tpu.memory_space<vmem>>, %arg21: memref<16x32xf32, #tpu.memory_space<vmem>>, %arg22: memref<16x16xf32, #tpu.memory_space<vmem>>) attributes {dimension_semantics = [#tpu.dimension_semantics<parallel>, #tpu.dimension_semantics<arbitrary>], iteration_bounds = array<i64: 2, 2>, scalar_prefetch = 0 : i64, scratch_operands = 2 : i64, tpu.core_type = #tpu.core_type<tc>, window_params = [{transform_indices = @transform_0, window_bounds = array<i64: 1, 16, 32>}, {transform_indices = @transform_1, window_bounds = array<i64: 1, 1, 16>}, {transform_indices = @transform_2, window_bounds = array<i64: 1, 1, 32>}, {transform_indices = @transform_3, window_bounds = array<i64: 1, 1, 32>}, {transform_indices = @transform_4, window_bounds = array<i64: 1, 32, 96>}, {transform_indices = @transform_5, window_bounds = array<i64: 1, 1, 96>}, {transform_indices = @transform_6, window_bounds = array<i64: 1, 32, 32>}, {transform_indices = @transform_7, window_bounds = array<i64: 1, 1, 32>}, {transform_indices = @transform_8, window_bounds = array<i64: 1, 1, 32>}, {transform_indices = @transform_9, window_bounds = array<i64: 1, 1, 32>}, {transform_indices = @transform_10, window_bounds = array<i64: 1, 32, 128>}, {transform_indices = @transform_11, window_bounds = array<i64: 1, 1, 128>}, {transform_indices = @transform_12, window_bounds = array<i64: 1, 128, 32>}, {transform_indices = @transform_13, window_bounds = array<i64: 1, 1, 32>}, {pipeline_mode = #tpu.pipeline_mode<synchronous>, transform_indices = @transform_14, window_bounds = array<i64: 1, 32>}, {pipeline_mode = #tpu.pipeline_mode<synchronous>, transform_indices = @transform_15, window_bounds = array<i64: 1, 32>}, {transform_indices = @transform_16, window_bounds = array<i64: 1, 16, 32>}, {transform_indices = @transform_17, window_bounds = array<i64: 1, 1, 16, 32>}, {transform_indices = @transform_18, window_bounds = array<i64: 1, 1, 16, 32>}]} {
    %c0_i32 = arith.constant 0 : i32
    %0 = arith.cmpi eq, %arg1, %c0_i32 : i32
    %1 = arith.extui %0 : i1 to i32
    %c0_i32_0 = arith.constant 0 : i32
    %2 = arith.cmpi ne, %1, %c0_i32_0 : i32
    scf.if %2 {
      %c0_72 = arith.constant 0 : index
      %c0_73 = arith.constant 0 : index
      %c0_74 = arith.constant 0 : index
      %144 = vector.load %arg2[%c0_72, %c0_73, %c0_74] : memref<1x16x32xf32, #tpu.memory_space<vmem>>, vector<1x16x32xf32>
      %145 = vector.shape_cast %144 : vector<1x16x32xf32> to vector<16x32xf32>
      %c0_75 = arith.constant 0 : index
      %c0_76 = arith.constant 0 : index
      %146 = vector.load %arg21[%c0_75, %c0_76] : memref<16x32xf32, #tpu.memory_space<vmem>>, vector<16x32xf32>
      tpu.vector_store %arg21[%c0_75, %c0_76], %145 {strides = array<i32>} : memref<16x32xf32, #tpu.memory_space<vmem>>, vector<16x32xf32>,
      %147 = tpu.iota {dimensions = array<i32: 0>} : vector<16x16xi32>
      %148 = tpu.iota {dimensions = array<i32: 1>} : vector<16x16xi32>
      %149 = arith.cmpi sle, %148, %147 : vector<16x16xi32>
      %cst_77 = arith.constant 0.000000e+00 : f32
      %cst_78 = arith.constant -1.000000e+09 : f32
      %150 = vector.broadcast %cst_77 : f32 to vector<16x16xf32>
      %151 = vector.broadcast %cst_78 : f32 to vector<16x16xf32>
      %152 = arith.select %149, %150, %151 : vector<16x16xi1>, vector<16x16xf32>
      %c0_79 = arith.constant 0 : index
      %c0_80 = arith.constant 0 : index
      %c0_81 = arith.constant 0 : index
      %153 = vector.load %arg3[%c0_79, %c0_80, %c0_81] : memref<1x1x16xf32, #tpu.memory_space<vmem>>, vector<1x1x16xf32>
      %154 = vector.shape_cast %153 : vector<1x1x16xf32> to vector<1x16xf32>
      %155 = vector.broadcast %154 : vector<1x16xf32> to vector<16x16xf32>
      %156 = arith.addf %152, %155 : vector<16x16xf32>
      %c0_82 = arith.constant 0 : index
      %c0_83 = arith.constant 0 : index
      %157 = vector.load %arg22[%c0_82, %c0_83] : memref<16x16xf32, #tpu.memory_space<vmem>>, vector<16x16xf32>
      tpu.vector_store %arg22[%c0_82, %c0_83], %156 {strides = array<i32>} : memref<16x16xf32, #tpu.memory_space<vmem>>, vector<16x16xf32>,
    } else {
    }
    %c0 = arith.constant 0 : index
    %c0_1 = arith.constant 0 : index
    %3 = vector.load %arg21[%c0, %c0_1] : memref<16x32xf32, #tpu.memory_space<vmem>>, vector<16x32xf32>
    %c0_2 = arith.constant 0 : index
    %c0_3 = arith.constant 0 : index
    %c0_4 = arith.constant 0 : index
    %4 = vector.load %arg4[%c0_2, %c0_3, %c0_4] : memref<1x1x32xf32, #tpu.memory_space<vmem>>, vector<1x1x32xf32>
    %5 = vector.shape_cast %4 : vector<1x1x32xf32> to vector<1x32xf32>
    %c0_5 = arith.constant 0 : index
    %c0_6 = arith.constant 0 : index
    %c0_7 = arith.constant 0 : index
    %6 = vector.load %arg5[%c0_5, %c0_6, %c0_7] : memref<1x1x32xf32, #tpu.memory_space<vmem>>, vector<1x1x32xf32>
    %7 = vector.shape_cast %6 : vector<1x1x32xf32> to vector<1x32xf32>
    %cst = arith.constant dense<0.000000e+00> : vector<16xf32>
    %8 = vector.multi_reduction <add>, %3, %cst [1] : vector<16x32xf32> to vector<16xf32>
    %9 = vector.shape_cast %8 : vector<16xf32> to vector<16x1xf32>
    %cst_8 = arith.constant 3.200000e+01 : f32
    %10 = vector.broadcast %cst_8 : f32 to vector<16x1xf32>
    %11 = arith.divf %9, %10 : vector<16x1xf32>
    %12 = vector.broadcast %11 : vector<16x1xf32> to vector<16x32xf32>
    %13 = arith.subf %3, %12 : vector<16x32xf32>
    %14 = arith.mulf %13, %13 : vector<16x32xf32>
    %cst_9 = arith.constant dense<0.000000e+00> : vector<16xf32>
    %15 = vector.multi_reduction <add>, %14, %cst_9 [1] : vector<16x32xf32> to vector<16xf32>
    %16 = vector.shape_cast %15 : vector<16xf32> to vector<16x1xf32>
    %cst_10 = arith.constant 3.200000e+01 : f32
    %17 = vector.broadcast %cst_10 : f32 to vector<16x1xf32>
    %18 = arith.divf %16, %17 : vector<16x1xf32>
    %19 = vector.broadcast %11 : vector<16x1xf32> to vector<16x32xf32>
    %20 = arith.subf %3, %19 : vector<16x32xf32>
    %cst_11 = arith.constant 9.99999974E-6 : f32
    %21 = vector.broadcast %cst_11 : f32 to vector<16x1xf32>
    %22 = arith.addf %18, %21 : vector<16x1xf32>
    %23 = math.rsqrt %22 : vector<16x1xf32>
    %24 = vector.broadcast %23 : vector<16x1xf32> to vector<16x32xf32>
    %25 = arith.mulf %20, %24 : vector<16x32xf32>
    %26 = vector.broadcast %5 : vector<1x32xf32> to vector<16x32xf32>
    %27 = arith.mulf %25, %26 : vector<16x32xf32>
    %28 = vector.broadcast %7 : vector<1x32xf32> to vector<16x32xf32>
    %29 = arith.addf %27, %28 : vector<16x32xf32>
    %30 = arith.truncf %29 : vector<16x32xf32> to vector<16x32xbf16>
    %c0_12 = arith.constant 0 : index
    %c0_13 = arith.constant 0 : index
    %c0_14 = arith.constant 0 : index
    %31 = vector.load %arg6[%c0_12, %c0_13, %c0_14] : memref<1x32x96xbf16, #tpu.memory_space<vmem>>, vector<1x32x96xbf16>
    %32 = vector.shape_cast %31 : vector<1x32x96xbf16> to vector<32x96xbf16>
    %cst_15 = arith.constant dense<0.000000e+00> : vector<16x96xf32>
    %33 = tpu.matmul %30, %32, %cst_15 {dimension_numbers = #tpu.dot_dimension_numbers<[1], [0], [0], [1], [0, 0, 1, 1], [], []>} : vector<16x32xbf16>, vector<32x96xbf16>, vector<16x96xf32> -> vector<16x96xf32>
    %c0_16 = arith.constant 0 : index
    %c0_17 = arith.constant 0 : index
    %c0_18 = arith.constant 0 : index
    %34 = vector.load %arg7[%c0_16, %c0_17, %c0_18] : memref<1x1x96xf32, #tpu.memory_space<vmem>>, vector<1x1x96xf32>
    %35 = vector.shape_cast %34 : vector<1x1x96xf32> to vector<1x96xf32>
    %36 = vector.broadcast %35 : vector<1x96xf32> to vector<16x96xf32>
    %37 = arith.addf %33, %36 : vector<16x96xf32>
    %38 = vector.extract_strided_slice %37 {offsets = [0, 0], sizes = [16, 32], strides = [1, 1]} : vector<16x96xf32> to vector<16x32xf32>
    %39 = vector.extract_strided_slice %37 {offsets = [0, 32], sizes = [16, 32], strides = [1, 1]} : vector<16x96xf32> to vector<16x32xf32>
    %40 = vector.extract_strided_slice %37 {offsets = [0, 64], sizes = [16, 32], strides = [1, 1]} : vector<16x96xf32> to vector<16x32xf32>
    %c0_19 = arith.constant 0 : index
    %c0_20 = arith.constant 0 : index
    %c0_21 = arith.constant 0 : index
    %c0_22 = arith.constant 0 : index
    %41 = vector.load %arg19[%c0_19, %c0_20, %c0_21, %c0_22] : memref<1x1x16x32xf32, #tpu.memory_space<vmem>>, vector<1x1x16x32xf32>
    %42 = vector.shape_cast %41 : vector<1x1x16x32xf32> to vector<16x32xf32>
    %43 = vector.shape_cast %39 : vector<16x32xf32> to vector<1x1x16x32xf32>
    tpu.vector_store %arg19[%c0_19, %c0_20, %c0_21, %c0_22], %43 {strides = array<i32>} : memref<1x1x16x32xf32, #tpu.memory_space<vmem>>, vector<1x1x16x32xf32>,
    %c0_23 = arith.constant 0 : index
    %c0_24 = arith.constant 0 : index
    %c0_25 = arith.constant 0 : index
    %c0_26 = arith.constant 0 : index
    %44 = vector.load %arg20[%c0_23, %c0_24, %c0_25, %c0_26] : memref<1x1x16x32xf32, #tpu.memory_space<vmem>>, vector<1x1x16x32xf32>
    %45 = vector.shape_cast %44 : vector<1x1x16x32xf32> to vector<16x32xf32>
    %46 = vector.shape_cast %40 : vector<16x32xf32> to vector<1x1x16x32xf32>
    tpu.vector_store %arg20[%c0_23, %c0_24, %c0_25, %c0_26], %46 {strides = array<i32>} : memref<1x1x16x32xf32, #tpu.memory_space<vmem>>, vector<1x1x16x32xf32>,
    %47 = vector.shape_cast %38 : vector<16x32xf32> to vector<16x2x16xf32>
    %48 = tpu.transpose %47, [1, 0, 2] : vector<16x2x16xf32> -> vector<2x16x16xf32>
    %49 = arith.truncf %48 : vector<2x16x16xf32> to vector<2x16x16xbf16>
    %50 = vector.shape_cast %39 : vector<16x32xf32> to vector<16x2x16xf32>
    %51 = tpu.transpose %50, [1, 0, 2] : vector<16x2x16xf32> -> vector<2x16x16xf32>
    %52 = arith.truncf %51 : vector<2x16x16xf32> to vector<2x16x16xbf16>
    %53 = vector.shape_cast %40 : vector<16x32xf32> to vector<16x2x16xf32>
    %54 = tpu.transpose %53, [1, 0, 2] : vector<16x2x16xf32> -> vector<2x16x16xf32>
    %55 = arith.truncf %54 : vector<2x16x16xf32> to vector<2x16x16xbf16>
    "tpu.trace_start"() <{level = 10 : i32, message = "hqd,hkd->hqk"}> : () -> ()
    %cst_27 = arith.constant dense<0.000000e+00> : vector<2x16x16xf32>
    %56 = tpu.matmul %49, %52, %cst_27 {dimension_numbers = #tpu.dot_dimension_numbers<[2], [2], [1], [1], [0, 0, 0, 1, 1, 1], [0], [0]>} : vector<2x16x16xbf16>, vector<2x16x16xbf16>, vector<2x16x16xf32> -> vector<2x16x16xf32>
    "tpu.trace_stop"() : () -> ()
    %c0_28 = arith.constant 0 : index
    %c0_29 = arith.constant 0 : index
    %57 = vector.load %arg22[%c0_28, %c0_29] : memref<16x16xf32, #tpu.memory_space<vmem>>, vector<16x16xf32>
    %58 = vector.shape_cast %57 : vector<16x16xf32> to vector<1x16x16xf32>
    %59 = vector.broadcast %58 : vector<1x16x16xf32> to vector<2x16x16xf32>
    %60 = arith.addf %56, %59 : vector<2x16x16xf32>
    %cst_30 = arith.constant dense<0xFF800000> : vector<2x16xf32>
    %61 = vector.multi_reduction <maximumf>, %60, %cst_30 [2] : vector<2x16x16xf32> to vector<2x16xf32>
    %62 = vector.shape_cast %61 : vector<2x16xf32> to vector<2x16x1xf32>
    %63 = vector.broadcast %62 : vector<2x16x1xf32> to vector<2x16x16xf32>
    %64 = arith.subf %60, %63 : vector<2x16x16xf32>
    %65 = math.exp %64 : vector<2x16x16xf32>
    %cst_31 = arith.constant dense<0.000000e+00> : vector<2x16xf32>
    %66 = vector.multi_reduction <add>, %65, %cst_31 [2] : vector<2x16x16xf32> to vector<2x16xf32>
    %67 = vector.shape_cast %66 : vector<2x16xf32> to vector<2x16x1xf32>
    %68 = tpu.reciprocal %67 {approx = true} : vector<2x16x1xf32> -> vector<2x16x1xf32>
    %69 = vector.broadcast %68 : vector<2x16x1xf32> to vector<2x16x16xf32>
    %70 = arith.mulf %65, %69 : vector<2x16x16xf32>
    %71 = arith.truncf %70 : vector<2x16x16xf32> to vector<2x16x16xbf16>
    "tpu.trace_start"() <{level = 10 : i32, message = "hqk,hkd->hqd"}> : () -> ()
    %cst_32 = arith.constant dense<0.000000e+00> : vector<2x16x16xf32>
    %72 = tpu.matmul %71, %55, %cst_32 {dimension_numbers = #tpu.dot_dimension_numbers<[2], [1], [1], [2], [0, 0, 0, 1, 1, 2], [0], [0]>} : vector<2x16x16xbf16>, vector<2x16x16xbf16>, vector<2x16x16xf32> -> vector<2x16x16xf32>
    "tpu.trace_stop"() : () -> ()
    %73 = tpu.transpose %72, [1, 0, 2] : vector<2x16x16xf32> -> vector<16x2x16xf32>
    %74 = vector.shape_cast %73 : vector<16x2x16xf32> to vector<16x32xf32>
    %75 = arith.truncf %74 : vector<16x32xf32> to vector<16x32xbf16>
    %c0_33 = arith.constant 0 : index
    %c0_34 = arith.constant 0 : index
    %c0_35 = arith.constant 0 : index
    %76 = vector.load %arg8[%c0_33, %c0_34, %c0_35] : memref<1x32x32xbf16, #tpu.memory_space<vmem>>, vector<1x32x32xbf16>
    %77 = vector.shape_cast %76 : vector<1x32x32xbf16> to vector<32x32xbf16>
    %cst_36 = arith.constant dense<0.000000e+00> : vector<16x32xf32>
    %78 = tpu.matmul %75, %77, %cst_36 {dimension_numbers = #tpu.dot_dimension_numbers<[1], [0], [0], [1], [0, 0, 1, 1], [], []>} : vector<16x32xbf16>, vector<32x32xbf16>, vector<16x32xf32> -> vector<16x32xf32>
    %c0_37 = arith.constant 0 : index
    %c0_38 = arith.constant 0 : index
    %c0_39 = arith.constant 0 : index
    %79 = vector.load %arg9[%c0_37, %c0_38, %c0_39] : memref<1x1x32xf32, #tpu.memory_space<vmem>>, vector<1x1x32xf32>
    %80 = vector.shape_cast %79 : vector<1x1x32xf32> to vector<1x32xf32>
    %81 = vector.broadcast %80 : vector<1x32xf32> to vector<16x32xf32>
    %82 = arith.addf %78, %81 : vector<16x32xf32>
    %83 = arith.addf %3, %82 : vector<16x32xf32>
    %c0_40 = arith.constant 0 : index
    %c0_41 = arith.constant 0 : index
    %c0_42 = arith.constant 0 : index
    %84 = vector.load %arg10[%c0_40, %c0_41, %c0_42] : memref<1x1x32xf32, #tpu.memory_space<vmem>>, vector<1x1x32xf32>
    %85 = vector.shape_cast %84 : vector<1x1x32xf32> to vector<1x32xf32>
    %c0_43 = arith.constant 0 : index
    %c0_44 = arith.constant 0 : index
    %c0_45 = arith.constant 0 : index
    %86 = vector.load %arg11[%c0_43, %c0_44, %c0_45] : memref<1x1x32xf32, #tpu.memory_space<vmem>>, vector<1x1x32xf32>
    %87 = vector.shape_cast %86 : vector<1x1x32xf32> to vector<1x32xf32>
    %cst_46 = arith.constant dense<0.000000e+00> : vector<16xf32>
    %88 = vector.multi_reduction <add>, %83, %cst_46 [1] : vector<16x32xf32> to vector<16xf32>
    %89 = vector.shape_cast %88 : vector<16xf32> to vector<16x1xf32>
    %cst_47 = arith.constant 3.200000e+01 : f32
    %90 = vector.broadcast %cst_47 : f32 to vector<16x1xf32>
    %91 = arith.divf %89, %90 : vector<16x1xf32>
    %92 = vector.broadcast %91 : vector<16x1xf32> to vector<16x32xf32>
    %93 = arith.subf %83, %92 : vector<16x32xf32>
    %94 = arith.mulf %93, %93 : vector<16x32xf32>
    %cst_48 = arith.constant dense<0.000000e+00> : vector<16xf32>
    %95 = vector.multi_reduction <add>, %94, %cst_48 [1] : vector<16x32xf32> to vector<16xf32>
    %96 = vector.shape_cast %95 : vector<16xf32> to vector<16x1xf32>
    %cst_49 = arith.constant 3.200000e+01 : f32
    %97 = vector.broadcast %cst_49 : f32 to vector<16x1xf32>
    %98 = arith.divf %96, %97 : vector<16x1xf32>
    %99 = vector.broadcast %91 : vector<16x1xf32> to vector<16x32xf32>
    %100 = arith.subf %83, %99 : vector<16x32xf32>
    %cst_50 = arith.constant 9.99999974E-6 : f32
    %101 = vector.broadcast %cst_50 : f32 to vector<16x1xf32>
    %102 = arith.addf %98, %101 : vector<16x1xf32>
    %103 = math.rsqrt %102 : vector<16x1xf32>
    %104 = vector.broadcast %103 : vector<16x1xf32> to vector<16x32xf32>
    %105 = arith.mulf %100, %104 : vector<16x32xf32>
    %106 = vector.broadcast %85 : vector<1x32xf32> to vector<16x32xf32>
    %107 = arith.mulf %105, %106 : vector<16x32xf32>
    %108 = vector.broadcast %87 : vector<1x32xf32> to vector<16x32xf32>
    %109 = arith.addf %107, %108 : vector<16x32xf32>
    %110 = arith.truncf %109 : vector<16x32xf32> to vector<16x32xbf16>
    %c0_51 = arith.constant 0 : index
    %c0_52 = arith.constant 0 : index
    %c0_53 = arith.constant 0 : index
    %111 = vector.load %arg12[%c0_51, %c0_52, %c0_53] : memref<1x32x128xbf16, #tpu.memory_space<vmem>>, vector<1x32x128xbf16>
    %112 = vector.shape_cast %111 : vector<1x32x128xbf16> to vector<32x128xbf16>
    %cst_54 = arith.constant dense<0.000000e+00> : vector<16x128xf32>
    %113 = tpu.matmul %110, %112, %cst_54 {dimension_numbers = #tpu.dot_dimension_numbers<[1], [0], [0], [1], [0, 0, 1, 1], [], []>} : vector<16x32xbf16>, vector<32x128xbf16>, vector<16x128xf32> -> vector<16x128xf32>
    %c0_55 = arith.constant 0 : index
    %c0_56 = arith.constant 0 : index
    %c0_57 = arith.constant 0 : index
    %114 = vector.load %arg13[%c0_55, %c0_56, %c0_57] : memref<1x1x128xf32, #tpu.memory_space<vmem>>, vector<1x1x128xf32>
    %115 = vector.shape_cast %114 : vector<1x1x128xf32> to vector<1x128xf32>
    %116 = vector.broadcast %115 : vector<1x128xf32> to vector<16x128xf32>
    %117 = arith.addf %113, %116 : vector<16x128xf32>
    %cst_58 = arith.constant 5.000000e-01 : f32
    %118 = vector.broadcast %cst_58 : f32 to vector<16x128xf32>
    %119 = arith.mulf %118, %117 : vector<16x128xf32>
    %cst_59 = arith.constant 4.471500e-02 : f32
    %120 = vector.broadcast %cst_59 : f32 to vector<16x128xf32>
    %121 = arith.mulf %120, %117 : vector<16x128xf32>
    %122 = arith.mulf %121, %117 : vector<16x128xf32>
    %123 = arith.mulf %122, %117 : vector<16x128xf32>
    %124 = arith.addf %117, %123 : vector<16x128xf32>
    %cst_60 = arith.constant 0.797884583 : f32
    %125 = vector.broadcast %cst_60 : f32 to vector<16x128xf32>
    %126 = arith.mulf %125, %124 : vector<16x128xf32>
    %127 = math.tanh %126 : vector<16x128xf32>
    %cst_61 = arith.constant 1.000000e+00 : f32
    %128 = vector.broadcast %cst_61 : f32 to vector<16x128xf32>
    %129 = arith.addf %128, %127 : vector<16x128xf32>
    %130 = arith.mulf %119, %129 : vector<16x128xf32>
    %131 = arith.truncf %130 : vector<16x128xf32> to vector<16x128xbf16>
    %c0_62 = arith.constant 0 : index
    %c0_63 = arith.constant 0 : index
    %c0_64 = arith.constant 0 : index
    %132 = vector.load %arg14[%c0_62, %c0_63, %c0_64] : memref<1x128x32xbf16, #tpu.memory_space<vmem>>, vector<1x128x32xbf16>
    %133 = vector.shape_cast %132 : vector<1x128x32xbf16> to vector<128x32xbf16>
    %cst_65 = arith.constant dense<0.000000e+00> : vector<16x32xf32>
    %134 = tpu.matmul %131, %133, %cst_65 {dimension_numbers = #tpu.dot_dimension_numbers<[1], [0], [0], [1], [0, 0, 1, 1], [], []>} : vector<16x128xbf16>, vector<128x32xbf16>, vector<16x32xf32> -> vector<16x32xf32>
    %c0_66 = arith.constant 0 : index
    %c0_67 = arith.constant 0 : index
    %c0_68 = arith.constant 0 : index
    %135 = vector.load %arg15[%c0_66, %c0_67, %c0_68] : memref<1x1x32xf32, #tpu.memory_space<vmem>>, vector<1x1x32xf32>
    %136 = vector.shape_cast %135 : vector<1x1x32xf32> to vector<1x32xf32>
    %137 = vector.broadcast %136 : vector<1x32xf32> to vector<16x32xf32>
    %138 = arith.addf %134, %137 : vector<16x32xf32>
    %139 = arith.addf %83, %138 : vector<16x32xf32>
    %c0_69 = arith.constant 0 : index
    %c0_70 = arith.constant 0 : index
    %140 = vector.load %arg21[%c0_69, %c0_70] : memref<16x32xf32, #tpu.memory_space<vmem>>, vector<16x32xf32>
    tpu.vector_store %arg21[%c0_69, %c0_70], %139 {strides = array<i32>} : memref<16x32xf32, #tpu.memory_space<vmem>>, vector<16x32xf32>,
    %c1_i32 = arith.constant 1 : i32
    %141 = arith.cmpi eq, %arg1, %c1_i32 : i32
    %142 = arith.extui %141 : i1 to i32
    %c0_i32_71 = arith.constant 0 : i32
    %143 = arith.cmpi ne, %142, %c0_i32_71 : i32
    scf.if %143 {
      %c0_72 = arith.constant 0 : index
      %c0_73 = arith.constant 0 : index
      %144 = vector.load %arg16[%c0_72, %c0_73] : memref<1x32xf32, #tpu.memory_space<vmem>>, vector<1x32xf32>
      %c0_74 = arith.constant 0 : index
      %c0_75 = arith.constant 0 : index
      %145 = vector.load %arg17[%c0_74, %c0_75] : memref<1x32xf32, #tpu.memory_space<vmem>>, vector<1x32xf32>
      %cst_76 = arith.constant dense<0.000000e+00> : vector<16xf32>
      %146 = vector.multi_reduction <add>, %139, %cst_76 [1] : vector<16x32xf32> to vector<16xf32>
      %147 = vector.shape_cast %146 : vector<16xf32> to vector<16x1xf32>
      %cst_77 = arith.constant 3.200000e+01 : f32
      %148 = vector.broadcast %cst_77 : f32 to vector<16x1xf32>
      %149 = arith.divf %147, %148 : vector<16x1xf32>
      %150 = vector.broadcast %149 : vector<16x1xf32> to vector<16x32xf32>
      %151 = arith.subf %139, %150 : vector<16x32xf32>
      %152 = arith.mulf %151, %151 : vector<16x32xf32>
      %cst_78 = arith.constant dense<0.000000e+00> : vector<16xf32>
      %153 = vector.multi_reduction <add>, %152, %cst_78 [1] : vector<16x32xf32> to vector<16xf32>
      %154 = vector.shape_cast %153 : vector<16xf32> to vector<16x1xf32>
      %cst_79 = arith.constant 3.200000e+01 : f32
      %155 = vector.broadcast %cst_79 : f32 to vector<16x1xf32>
      %156 = arith.divf %154, %155 : vector<16x1xf32>
      %157 = vector.broadcast %149 : vector<16x1xf32> to vector<16x32xf32>
      %158 = arith.subf %139, %157 : vector<16x32xf32>
      %cst_80 = arith.constant 9.99999974E-6 : f32
      %159 = vector.broadcast %cst_80 : f32 to vector<16x1xf32>
      %160 = arith.addf %156, %159 : vector<16x1xf32>
      %161 = math.rsqrt %160 : vector<16x1xf32>
      %162 = vector.broadcast %161 : vector<16x1xf32> to vector<16x32xf32>
      %163 = arith.mulf %158, %162 : vector<16x32xf32>
      %164 = vector.broadcast %144 : vector<1x32xf32> to vector<16x32xf32>
      %165 = arith.mulf %163, %164 : vector<16x32xf32>
      %166 = vector.broadcast %145 : vector<1x32xf32> to vector<16x32xf32>
      %167 = arith.addf %165, %166 : vector<16x32xf32>
      %c0_81 = arith.constant 0 : index
      %c0_82 = arith.constant 0 : index
      %c0_83 = arith.constant 0 : index
      %168 = vector.load %arg18[%c0_81, %c0_82, %c0_83] : memref<1x16x32xf32, #tpu.memory_space<vmem>>, vector<1x16x32xf32>
      %169 = vector.shape_cast %168 : vector<1x16x32xf32> to vector<16x32xf32>
      %170 = vector.shape_cast %167 : vector<16x32xf32> to vector<1x16x32xf32>
      tpu.vector_store %arg18[%c0_81, %c0_82, %c0_83], %170 {strides = array<i32>} : memref<1x16x32xf32, #tpu.memory_space<vmem>>, vector<1x16x32xf32>,
    } else {
    }
    return
  }
  func.func @transform_0(%arg0: i32, %arg1: i32) -> (i32, i32, i32) {
    %c0_i32 = arith.constant 0 : i32
    %c0_i32_0 = arith.constant 0 : i32
    %c0_i32_1 = arith.constant 0 : i32
    return %arg0, %c0_i32, %c0_i32_0 : i32, i32, i32
  }
  func.func @transform_1(%arg0: i32, %arg1: i32) -> (i32, i32, i32) {
    %c0_i32 = arith.constant 0 : i32
    %c0_i32_0 = arith.constant 0 : i32
    %c0_i32_1 = arith.constant 0 : i32
    return %arg0, %c0_i32, %c0_i32_0 : i32, i32, i32
  }
  func.func @transform_2(%arg0: i32, %arg1: i32) -> (i32, i32, i32) {
    %c0_i32 = arith.constant 0 : i32
    %c0_i32_0 = arith.constant 0 : i32
    %c0_i32_1 = arith.constant 0 : i32
    return %arg1, %c0_i32, %c0_i32_0 : i32, i32, i32
  }
  func.func @transform_3(%arg0: i32, %arg1: i32) -> (i32, i32, i32) {
    %c0_i32 = arith.constant 0 : i32
    %c0_i32_0 = arith.constant 0 : i32
    %c0_i32_1 = arith.constant 0 : i32
    return %arg1, %c0_i32, %c0_i32_0 : i32, i32, i32
  }
  func.func @transform_4(%arg0: i32, %arg1: i32) -> (i32, i32, i32) {
    %c0_i32 = arith.constant 0 : i32
    %c0_i32_0 = arith.constant 0 : i32
    %c0_i32_1 = arith.constant 0 : i32
    return %arg1, %c0_i32, %c0_i32_0 : i32, i32, i32
  }
  func.func @transform_5(%arg0: i32, %arg1: i32) -> (i32, i32, i32) {
    %c0_i32 = arith.constant 0 : i32
    %c0_i32_0 = arith.constant 0 : i32
    %c0_i32_1 = arith.constant 0 : i32
    return %arg1, %c0_i32, %c0_i32_0 : i32, i32, i32
  }
  func.func @transform_6(%arg0: i32, %arg1: i32) -> (i32, i32, i32) {
    %c0_i32 = arith.constant 0 : i32
    %c0_i32_0 = arith.constant 0 : i32
    %c0_i32_1 = arith.constant 0 : i32
    return %arg1, %c0_i32, %c0_i32_0 : i32, i32, i32
  }
  func.func @transform_7(%arg0: i32, %arg1: i32) -> (i32, i32, i32) {
    %c0_i32 = arith.constant 0 : i32
    %c0_i32_0 = arith.constant 0 : i32
    %c0_i32_1 = arith.constant 0 : i32
    return %arg1, %c0_i32, %c0_i32_0 : i32, i32, i32
  }
  func.func @transform_8(%arg0: i32, %arg1: i32) -> (i32, i32, i32) {
    %c0_i32 = arith.constant 0 : i32
    %c0_i32_0 = arith.constant 0 : i32
    %c0_i32_1 = arith.constant 0 : i32
    return %arg1, %c0_i32, %c0_i32_0 : i32, i32, i32
  }
  func.func @transform_9(%arg0: i32, %arg1: i32) -> (i32, i32, i32) {
    %c0_i32 = arith.constant 0 : i32
    %c0_i32_0 = arith.constant 0 : i32
    %c0_i32_1 = arith.constant 0 : i32
    return %arg1, %c0_i32, %c0_i32_0 : i32, i32, i32
  }
  func.func @transform_10(%arg0: i32, %arg1: i32) -> (i32, i32, i32) {
    %c0_i32 = arith.constant 0 : i32
    %c0_i32_0 = arith.constant 0 : i32
    %c0_i32_1 = arith.constant 0 : i32
    return %arg1, %c0_i32, %c0_i32_0 : i32, i32, i32
  }
  func.func @transform_11(%arg0: i32, %arg1: i32) -> (i32, i32, i32) {
    %c0_i32 = arith.constant 0 : i32
    %c0_i32_0 = arith.constant 0 : i32
    %c0_i32_1 = arith.constant 0 : i32
    return %arg1, %c0_i32, %c0_i32_0 : i32, i32, i32
  }
  func.func @transform_12(%arg0: i32, %arg1: i32) -> (i32, i32, i32) {
    %c0_i32 = arith.constant 0 : i32
    %c0_i32_0 = arith.constant 0 : i32
    %c0_i32_1 = arith.constant 0 : i32
    return %arg1, %c0_i32, %c0_i32_0 : i32, i32, i32
  }
  func.func @transform_13(%arg0: i32, %arg1: i32) -> (i32, i32, i32) {
    %c0_i32 = arith.constant 0 : i32
    %c0_i32_0 = arith.constant 0 : i32
    %c0_i32_1 = arith.constant 0 : i32
    return %arg1, %c0_i32, %c0_i32_0 : i32, i32, i32
  }
  func.func @transform_14(%arg0: i32, %arg1: i32) -> (i32, i32) {
    %c0_i32 = arith.constant 0 : i32
    %c0_i32_0 = arith.constant 0 : i32
    %c0_i32_1 = arith.constant 0 : i32
    return %c0_i32, %c0_i32_0 : i32, i32
  }
  func.func @transform_15(%arg0: i32, %arg1: i32) -> (i32, i32) {
    %c0_i32 = arith.constant 0 : i32
    %c0_i32_0 = arith.constant 0 : i32
    %c0_i32_1 = arith.constant 0 : i32
    return %c0_i32, %c0_i32_0 : i32, i32
  }
  func.func @transform_16(%arg0: i32, %arg1: i32) -> (i32, i32, i32) {
    %c0_i32 = arith.constant 0 : i32
    %c0_i32_0 = arith.constant 0 : i32
    %c0_i32_1 = arith.constant 0 : i32
    return %arg0, %c0_i32, %c0_i32_0 : i32, i32, i32
  }
  func.func @transform_17(%arg0: i32, %arg1: i32) -> (i32, i32, i32, i32) {
    %c0_i32 = arith.constant 0 : i32
    %c0_i32_0 = arith.constant 0 : i32
    %c0_i32_1 = arith.constant 0 : i32
    return %arg0, %arg1, %c0_i32, %c0_i32_0 : i32, i32, i32, i32
  }
  func.func @transform_18(%arg0: i32, %arg1: i32) -> (i32, i32, i32, i32) {
    %c0_i32 = arith.constant 0 : i32
    %c0_i32_0 = arith.constant 0 : i32
    %c0_i32_1 = arith.constant 0 : i32
    return %arg0, %arg1, %c0_i32, %c0_i32_0 : i32, i32, i32, i32
  }
}

</mosaic_0001>

<llo_original>
// kernel: tpu_custom_call.1
$region0: #{tpu_custom_call.1}
  #allocation0 [shape = 'u32[]', space=smem, size = 0x4, offset = 0x4, fixed_abs, tag = 'smem constant byte address 0x4 - core index']
  #allocation1 [shape = 'u32[144,128]{1,0:T(1,128)}', space=vmem, size = 0x12000, scoped, tag = 'internal scratch']
  #allocation2 [shape = 'f32[16,32]{1,0:T(8,128)}', space=vmem, size = 0x2000, scoped, tag = 'scratch operand']
  #allocation3 [shape = 'f32[16,16]{1,0:T(8,128)}', space=vmem, size = 0x2000, scoped, tag = 'scratch operand']
  %s0 = inlined_call_operand.vmem [shape: f32[2,16,32], index: 0, kind: input, shape index: {}]
  %s1 = inlined_call_operand.vmem [shape: f32[2,1,16], index: 1, kind: input, shape index: {}]
  %s2 = inlined_call_operand.vmem [shape: f32[2,1,32], index: 2, kind: input, shape index: {}]
  %s3 = inlined_call_operand.vmem [shape: f32[2,1,32], index: 3, kind: input, shape index: {}]
  %s4 = inlined_call_operand.vmem [shape: bf16[2,32,96], index: 4, kind: input, shape index: {}]
  %s5 = inlined_call_operand.vmem [shape: f32[2,1,96], index: 5, kind: input, shape index: {}]
  %s6 = inlined_call_operand.vmem [shape: bf16[2,32,32], index: 6, kind: input, shape index: {}]
  %s7 = inlined_call_operand.vmem [shape: f32[2,1,32], index: 7, kind: input, shape index: {}]
  %s8 = inlined_call_operand.vmem [shape: f32[2,1,32], index: 8, kind: input, shape index: {}]
  %s9 = inlined_call_operand.vmem [shape: f32[2,1,32], index: 9, kind: input, shape index: {}]
  %s10 = inlined_call_operand.vmem [shape: bf16[2,32,128], index: 10, kind: input, shape index: {}]
  %s11 = inlined_call_operand.vmem [shape: f32[2,1,128], index: 11, kind: input, shape index: {}]
  %s12 = inlined_call_operand.vmem [shape: bf16[2,128,32], index: 12, kind: input, shape index: {}]
  %s13 = inlined_call_operand.vmem [shape: f32[2,1,32], index: 13, kind: input, shape index: {}]
  %s14 = inlined_call_operand.vmem [shape: f32[1,32], index: 14, kind: input, shape index: {}]
  %s15 = inlined_call_operand.vmem [shape: f32[1,32], index: 15, kind: input, shape index: {}]
  %s16 = inlined_call_operand.hbm [shape: f32[2,16,32], index: 16, kind: output, shape index: {0}]
  %s17 = inlined_call_operand.hbm [shape: f32[2,2,16,32], index: 17, kind: output, shape index: {1}]
  %s18 = inlined_call_operand.hbm [shape: f32[2,2,16,32], index: 18, kind: output, shape index: {2}]
  %19 = xla_tuple %s16, %s17, %s18
  %s20 = sld [smem:[#allocation0]]
  $region121: #{tpu_custom_call.1} parent=0
    _
  %s22 = ssub.s32 1, %s20
  %s23 = scalar_select 0, %s22, %s20
  $region1: #{tpu_custom_call.1} parent=0
    #allocation4 [shape = 'u8[16384]{0}', space=vmem, size = 0x4000, scoped, tag = 'output window, operand 0']
    #allocation5 [shape = 's32[2]{0}', space=sflag, size = 0x8, scoped, tag = 'scoped memory for tpu_custom_call.1']
    #allocation6 [shape = 'u8[16384]{0}', space=vmem, size = 0x4000, scoped, tag = 'output window, operand 1']
    #allocation7 [shape = 's32[2]{0}', space=sflag, size = 0x8, scoped, tag = 'scoped memory for tpu_custom_call.1']
    #allocation8 [shape = 'u8[16384]{0}', space=vmem, size = 0x4000, scoped, tag = 'output window, operand 2']
    %24 = vsyncpa [#allocation5], 0
    %s25 = scalar_lea.sflag [#allocation5], 1
    %26 = vsyncpa %s25, 0
    %27 = vsyncpa [#allocation7], 0
    %s28 = scalar_lea.sflag [#allocation7], 1
    %29 = vsyncpa %s28, 0
    loop: start=0, step=1, limit=6
    $region2: #{tpu_custom_call.1} parent=1 // loop_pre_header
      _
    $region3: #{tpu_custom_call.1} parent=1 // loop_header
      %s31 = sphi 0, %s35
      %p32 = scmp.ge.s32.totalorder %s31, 6
      %s38 = sphi 0, %s50
      %s39 = sphi 0, %s46
      %s40 = sphi 0, %s38
      %s41 = sphi 0, %s39
      %s42 = sphi 0, %s40
      %s43 = sphi 0, %s41
      %s53 = sphi 0, %s55
      %s56 = sphi 0, %s53
      %s57 = sphi 0, %s56
      %s73 = sphi 0, %s57
      %s79 = sphi 0, %s81
      %s82 = sphi 0, %s79
      %s83 = sphi 0, %s82
      %s99 = sphi 0, %s83
      %s105 = sphi 0, %s107
      %s108 = sphi 0, %s105
      %s109 = sphi 0, %s108
      %s125 = sphi 0, %s109
      %s131 = sphi 0, %s133
      %s134 = sphi 0, %s131
      %s135 = sphi 0, %s134
      %s151 = sphi 0, %s135
      %s157 = sphi 0, %s159
      %s160 = sphi 0, %s157
      %s161 = sphi 0, %s160
      %s177 = sphi 0, %s161
      %s183 = sphi 0, %s185
      %s186 = sphi 0, %s183
      %s187 = sphi 0, %s186
      %s203 = sphi 0, %s187
      %s209 = sphi 0, %s211
      %s212 = sphi 0, %s209
      %s213 = sphi 0, %s212
      %s229 = sphi 0, %s213
      %s235 = sphi 0, %s237
      %s238 = sphi 0, %s235
      %s239 = sphi 0, %s238
      %s255 = sphi 0, %s239
      %s261 = sphi 0, %s263
      %s264 = sphi 0, %s261
      %s265 = sphi 0, %s264
      %s281 = sphi 0, %s265
      %s287 = sphi 0, %s289
      %s290 = sphi 0, %s287
      %s291 = sphi 0, %s290
      %s307 = sphi 0, %s291
      %s313 = sphi 0, %s315
      %s316 = sphi 0, %s313
      %s317 = sphi 0, %s316
      %s333 = sphi 0, %s317
      %s339 = sphi 0, %s341
      %s342 = sphi 0, %s339
      %s343 = sphi 0, %s342
      %s359 = sphi 0, %s343
      %s365 = sphi 0, %s367
      %s368 = sphi 0, %s365
      %s369 = sphi 0, %s368
      %s385 = sphi 0, %s369
      %s391 = sphi 0, %s393
      %s394 = sphi 0, %s391
      %s395 = sphi 0, %s394
      %s411 = sphi 0, %s395
      %s415 = sphi 0, %s415
      %s417 = sphi 0, %s415
      %s418 = sphi 0, %s417
      %s432 = sphi 0, %s418
      %s436 = sphi 0, %s436
      %s438 = sphi 0, %s436
      %s439 = sphi 0, %s438
      %s453 = sphi 0, %s439
      %s459 = sphi 0, %s461
      %s462 = sphi 0, %s459
      %s463 = sphi 0, %s462
      %s479 = sphi 0, %s463
      %s487 = sphi 0, %s489
      %s490 = sphi 0, %s487
      %s491 = sphi 0, %s490
      %s507 = sphi 0, %s491
      %s515 = sphi 0, %s517
      %s518 = sphi 0, %s515
      %s519 = sphi 0, %s518
      %s535 = sphi 0, %s519
    $region4: #{tpu_custom_call.1} parent=1 // loop_header_branch
      %34 = sbr.rel (%p32) target = $region8
    $region5: #{tpu_custom_call.1} parent=1 // loop_body
      %s36 = ssub.s32 %s31, 1
      %s37 = ssub.s32 %s31, 2
      %s44 = sadd.s32 1, %s39
      %p45 = scmp.ge.s32.totalorder %s44, 2
      %s46 = scalar_select %p45, 0, %s44
      %s47 = sadd.s32 1, %s38
      %s48 = scalar_select %p45, %s47, %s38
      %p49 = scmp.ge.s32.totalorder %s48, 2
      %s50 = scalar_select %p49, 0, %s48
      %s51 = ssub.s32 %s38, %s50
      %p52 = scmp.eq.s32.totalorder %s51, 0
      %s54 = sadd.s32 %s53, 1
      %s55 = scalar_select %p52, %s53, %s54
      %p58 = pneg %p52
      %p59 = scmp.eq.s32.totalorder %s31, 3
      %p60 = por %p58, %p59
      %p61 = scmp.ne.s32.totalorder %s53, %s56
      %p62 = scmp.eq.s32.totalorder %s31, 0
      %p63 = por %p61, %p62
      %p64 = scmp.ne.s32.totalorder %s53, %s56
      %p65 = scmp.eq.s32.totalorder %s36, 3
      %p66 = por %p64, %p65
      %p67 = scmp.ne.s32.totalorder %s56, %s57
      %p68 = scmp.eq.s32.totalorder %s36, 0
      %p69 = por %p67, %p68
      %p70 = scmp.ne.s32.totalorder %s56, %s57
      %p71 = scmp.eq.s32.totalorder %s37, 3
      %p72 = por %p70, %p71
      %p74 = scmp.ne.s32.totalorder %s57, %s73
      %p75 = scmp.eq.s32.totalorder %s37, 0
      %p76 = por %p74, %p75
      %s77 = ssub.s32 %s38, %s50
      %p78 = scmp.eq.s32.totalorder %s77, 0
      %s80 = sadd.s32 %s79, 1
      %s81 = scalar_select %p78, %s79, %s80
      %p84 = pneg %p78
      %p85 = scmp.eq.s32.totalorder %s31, 3
      %p86 = por %p84, %p85
      %p87 = scmp.ne.s32.totalorder %s79, %s82
      %p88 = scmp.eq.s32.totalorder %s31, 0
      %p89 = por %p87, %p88
      %p90 = scmp.ne.s32.totalorder %s79, %s82
      %p91 = scmp.eq.s32.totalorder %s36, 3
      %p92 = por %p90, %p91
      %p93 = scmp.ne.s32.totalorder %s82, %s83
      %p94 = scmp.eq.s32.totalorder %s36, 0
      %p95 = por %p93, %p94
      %p96 = scmp.ne.s32.totalorder %s82, %s83
      %p97 = scmp.eq.s32.totalorder %s37, 3
      %p98 = por %p96, %p97
      %p100 = scmp.ne.s32.totalorder %s83, %s99
      %p101 = scmp.eq.s32.totalorder %s37, 0
      %p102 = por %p100, %p101
      %s103 = ssub.s32 %s39, %s46
      %p104 = scmp.eq.s32.totalorder %s103, 0
      %s106 = sadd.s32 %s105, 1
      %s107 = scalar_select %p104, %s105, %s106
      %p110 = pneg %p104
      %p111 = scmp.eq.s32.totalorder %s31, 3
      %p112 = por %p110, %p111
      %p113 = scmp.ne.s32.totalorder %s105, %s108
      %p114 = scmp.eq.s32.totalorder %s31, 0
      %p115 = por %p113, %p114
      %p116 = scmp.ne.s32.totalorder %s105, %s108
      %p117 = scmp.eq.s32.totalorder %s36, 3
      %p118 = por %p116, %p117
      %p119 = scmp.ne.s32.totalorder %s108, %s109
      %p120 = scmp.eq.s32.totalorder %s36, 0
      %p121 = por %p119, %p120
      %p122 = scmp.ne.s32.totalorder %s108, %s109
      %p123 = scmp.eq.s32.totalorder %s37, 3
      %p124 = por %p122, %p123
      %p126 = scmp.ne.s32.totalorder %s109, %s125
      %p127 = scmp.eq.s32.totalorder %s37, 0
      %p128 = por %p126, %p127
      %s129 = ssub.s32 %s39, %s46
      %p130 = scmp.eq.s32.totalorder %s129, 0
      %s132 = sadd.s32 %s131, 1
      %s133 = scalar_select %p130, %s131, %s132
      %p136 = pneg %p130
      %p137 = scmp.eq.s32.totalorder %s31, 3
      %p138 = por %p136, %p137
      %p139 = scmp.ne.s32.totalorder %s131, %s134
      %p140 = scmp.eq.s32.totalorder %s31, 0
      %p141 = por %p139, %p140
      %p142 = scmp.ne.s32.totalorder %s131, %s134
      %p143 = scmp.eq.s32.totalorder %s36, 3
      %p144 = por %p142, %p143
      %p145 = scmp.ne.s32.totalorder %s134, %s135
      %p146 = scmp.eq.s32.totalorder %s36, 0
      %p147 = por %p145, %p146
      %p148 = scmp.ne.s32.totalorder %s134, %s135
      %p149 = scmp.eq.s32.totalorder %s37, 3
      %p150 = por %p148, %p149
      %p152 = scmp.ne.s32.totalorder %s135, %s151
      %p153 = scmp.eq.s32.totalorder %s37, 0
      %p154 = por %p152, %p153
      %s155 = ssub.s32 %s39, %s46
      %p156 = scmp.eq.s32.totalorder %s155, 0
      %s158 = sadd.s32 %s157, 1
      %s159 = scalar_select %p156, %s157, %s158
      %p162 = pneg %p156
      %p163 = scmp.eq.s32.totalorder %s31, 3
      %p164 = por %p162, %p163
      %p165 = scmp.ne.s32.totalorder %s157, %s160
      %p166 = scmp.eq.s32.totalorder %s31, 0
      %p167 = por %p165, %p166
      %p168 = scmp.ne.s32.totalorder %s157, %s160
      %p169 = scmp.eq.s32.totalorder %s36, 3
      %p170 = por %p168, %p169
      %p171 = scmp.ne.s32.totalorder %s160, %s161
      %p172 = scmp.eq.s32.totalorder %s36, 0
      %p173 = por %p171, %p172
      %p174 = scmp.ne.s32.totalorder %s160, %s161
      %p175 = scmp.eq.s32.totalorder %s37, 3
      %p176 = por %p174, %p175
      %p178 = scmp.ne.s32.totalorder %s161, %s177
      %p179 = scmp.eq.s32.totalorder %s37, 0
      %p180 = por %p178, %p179
      %s181 = ssub.s32 %s39, %s46
      %p182 = scmp.eq.s32.totalorder %s181, 0
      %s184 = sadd.s32 %s183, 1
      %s185 = scalar_select %p182, %s183, %s184
      %p188 = pneg %p182
      %p189 = scmp.eq.s32.totalorder %s31, 3
      %p190 = por %p188, %p189
      %p191 = scmp.ne.s32.totalorder %s183, %s186
      %p192 = scmp.eq.s32.totalorder %s31, 0
      %p193 = por %p191, %p192
      %p194 = scmp.ne.s32.totalorder %s183, %s186
      %p195 = scmp.eq.s32.totalorder %s36, 3
      %p196 = por %p194, %p195
      %p197 = scmp.ne.s32.totalorder %s186, %s187
      %p198 = scmp.eq.s32.totalorder %s36, 0
      %p199 = por %p197, %p198
      %p200 = scmp.ne.s32.totalorder %s186, %s187
      %p201 = scmp.eq.s32.totalorder %s37, 3
      %p202 = por %p200, %p201
      %p204 = scmp.ne.s32.totalorder %s187, %s203
      %p205 = scmp.eq.s32.totalorder %s37, 0
      %p206 = por %p204, %p205
      %s207 = ssub.s32 %s39, %s46
      %p208 = scmp.eq.s32.totalorder %s207, 0
      %s210 = sadd.s32 %s209, 1
      %s211 = scalar_select %p208, %s209, %s210
      %p214 = pneg %p208
      %p215 = scmp.eq.s32.totalorder %s31, 3
      %p216 = por %p214, %p215
      %p217 = scmp.ne.s32.totalorder %s209, %s212
      %p218 = scmp.eq.s32.totalorder %s31, 0
      %p219 = por %p217, %p218
      %p220 = scmp.ne.s32.totalorder %s209, %s212
      %p221 = scmp.eq.s32.totalorder %s36, 3
      %p222 = por %p220, %p221
      %p223 = scmp.ne.s32.totalorder %s212, %s213
      %p224 = scmp.eq.s32.totalorder %s36, 0
      %p225 = por %p223, %p224
      %p226 = scmp.ne.s32.totalorder %s212, %s213
      %p227 = scmp.eq.s32.totalorder %s37, 3
      %p228 = por %p226, %p227
      %p230 = scmp.ne.s32.totalorder %s213, %s229
      %p231 = scmp.eq.s32.totalorder %s37, 0
      %p232 = por %p230, %p231
      %s233 = ssub.s32 %s39, %s46
      %p234 = scmp.eq.s32.totalorder %s233, 0
      %s236 = sadd.s32 %s235, 1
      %s237 = scalar_select %p234, %s235, %s236
      %p240 = pneg %p234
      %p241 = scmp.eq.s32.totalorder %s31, 3
      %p242 = por %p240, %p241
      %p243 = scmp.ne.s32.totalorder %s235, %s238
      %p244 = scmp.eq.s32.totalorder %s31, 0
      %p245 = por %p243, %p244
      %p246 = scmp.ne.s32.totalorder %s235, %s238
      %p247 = scmp.eq.s32.totalorder %s36, 3
      %p248 = por %p246, %p247
      %p249 = scmp.ne.s32.totalorder %s238, %s239
      %p250 = scmp.eq.s32.totalorder %s36, 0
      %p251 = por %p249, %p250
      %p252 = scmp.ne.s32.totalorder %s238, %s239
      %p253 = scmp.eq.s32.totalorder %s37, 3
      %p254 = por %p252, %p253
      %p256 = scmp.ne.s32.totalorder %s239, %s255
      %p257 = scmp.eq.s32.totalorder %s37, 0
      %p258 = por %p256, %p257
      %s259 = ssub.s32 %s39, %s46
      %p260 = scmp.eq.s32.totalorder %s259, 0
      %s262 = sadd.s32 %s261, 1
      %s263 = scalar_select %p260, %s261, %s262
      %p266 = pneg %p260
      %p267 = scmp.eq.s32.totalorder %s31, 3
      %p268 = por %p266, %p267
      %p269 = scmp.ne.s32.totalorder %s261, %s264
      %p270 = scmp.eq.s32.totalorder %s31, 0
      %p271 = por %p269, %p270
      %p272 = scmp.ne.s32.totalorder %s261, %s264
      %p273 = scmp.eq.s32.totalorder %s36, 3
      %p274 = por %p272, %p273
      %p275 = scmp.ne.s32.totalorder %s264, %s265
      %p276 = scmp.eq.s32.totalorder %s36, 0
      %p277 = por %p275, %p276
      %p278 = scmp.ne.s32.totalorder %s264, %s265
      %p279 = scmp.eq.s32.totalorder %s37, 3
      %p280 = por %p278, %p279
      %p282 = scmp.ne.s32.totalorder %s265, %s281
      %p283 = scmp.eq.s32.totalorder %s37, 0
      %p284 = por %p282, %p283
      %s285 = ssub.s32 %s39, %s46
      %p286 = scmp.eq.s32.totalorder %s285, 0
      %s288 = sadd.s32 %s287, 1
      %s289 = scalar_select %p286, %s287, %s288
      %p292 = pneg %p286
      %p293 = scmp.eq.s32.totalorder %s31, 3
      %p294 = por %p292, %p293
      %p295 = scmp.ne.s32.totalorder %s287, %s290
      %p296 = scmp.eq.s32.totalorder %s31, 0
      %p297 = por %p295, %p296
      %p298 = scmp.ne.s32.totalorder %s287, %s290
      %p299 = scmp.eq.s32.totalorder %s36, 3
      %p300 = por %p298, %p299
      %p301 = scmp.ne.s32.totalorder %s290, %s291
      %p302 = scmp.eq.s32.totalorder %s36, 0
      %p303 = por %p301, %p302
      %p304 = scmp.ne.s32.totalorder %s290, %s291
      %p305 = scmp.eq.s32.totalorder %s37, 3
      %p306 = por %p304, %p305
      %p308 = scmp.ne.s32.totalorder %s291, %s307
      %p309 = scmp.eq.s32.totalorder %s37, 0
      %p310 = por %p308, %p309
      %s311 = ssub.s32 %s39, %s46
      %p312 = scmp.eq.s32.totalorder %s311, 0
      %s314 = sadd.s32 %s313, 1
      %s315 = scalar_select %p312, %s313, %s314
      %p318 = pneg %p312
      %p319 = scmp.eq.s32.totalorder %s31, 3
      %p320 = por %p318, %p319
      %p321 = scmp.ne.s32.totalorder %s313, %s316
      %p322 = scmp.eq.s32.totalorder %s31, 0
      %p323 = por %p321, %p322
      %p324 = scmp.ne.s32.totalorder %s313, %s316
      %p325 = scmp.eq.s32.totalorder %s36, 3
      %p326 = por %p324, %p325
      %p327 = scmp.ne.s32.totalorder %s316, %s317
      %p328 = scmp.eq.s32.totalorder %s36, 0
      %p329 = por %p327, %p328
      %p330 = scmp.ne.s32.totalorder %s316, %s317
      %p331 = scmp.eq.s32.totalorder %s37, 3
      %p332 = por %p330, %p331
      %p334 = scmp.ne.s32.totalorder %s317, %s333
      %p335 = scmp.eq.s32.totalorder %s37, 0
      %p336 = por %p334, %p335
      %s337 = ssub.s32 %s39, %s46
      %p338 = scmp.eq.s32.totalorder %s337, 0
      %s340 = sadd.s32 %s339, 1
      %s341 = scalar_select %p338, %s339, %s340
      %p344 = pneg %p338
      %p345 = scmp.eq.s32.totalorder %s31, 3
      %p346 = por %p344, %p345
      %p347 = scmp.ne.s32.totalorder %s339, %s342
      %p348 = scmp.eq.s32.totalorder %s31, 0
      %p349 = por %p347, %p348
      %p350 = scmp.ne.s32.totalorder %s339, %s342
      %p351 = scmp.eq.s32.totalorder %s36, 3
      %p352 = por %p350, %p351
      %p353 = scmp.ne.s32.totalorder %s342, %s343
      %p354 = scmp.eq.s32.totalorder %s36, 0
      %p355 = por %p353, %p354
      %p356 = scmp.ne.s32.totalorder %s342, %s343
      %p357 = scmp.eq.s32.totalorder %s37, 3
      %p358 = por %p356, %p357
      %p360 = scmp.ne.s32.totalorder %s343, %s359
      %p361 = scmp.eq.s32.totalorder %s37, 0
      %p362 = por %p360, %p361
      %s363 = ssub.s32 %s39, %s46
      %p364 = scmp.eq.s32.totalorder %s363, 0
      %s366 = sadd.s32 %s365, 1
      %s367 = scalar_select %p364, %s365, %s366
      %p370 = pneg %p364
      %p371 = scmp.eq.s32.totalorder %s31, 3
      %p372 = por %p370, %p371
      %p373 = scmp.ne.s32.totalorder %s365, %s368
      %p374 = scmp.eq.s32.totalorder %s31, 0
      %p375 = por %p373, %p374
      %p376 = scmp.ne.s32.totalorder %s365, %s368
      %p377 = scmp.eq.s32.totalorder %s36, 3
      %p378 = por %p376, %p377
      %p379 = scmp.ne.s32.totalorder %s368, %s369
      %p380 = scmp.eq.s32.totalorder %s36, 0
      %p381 = por %p379, %p380
      %p382 = scmp.ne.s32.totalorder %s368, %s369
      %p383 = scmp.eq.s32.totalorder %s37, 3
      %p384 = por %p382, %p383
      %p386 = scmp.ne.s32.totalorder %s369, %s385
      %p387 = scmp.eq.s32.totalorder %s37, 0
      %p388 = por %p386, %p387
      %s389 = ssub.s32 %s39, %s46
      %p390 = scmp.eq.s32.totalorder %s389, 0
      %s392 = sadd.s32 %s391, 1
      %s393 = scalar_select %p390, %s391, %s392
      %p396 = pneg %p390
      %p397 = scmp.eq.s32.totalorder %s31, 3
      %p398 = por %p396, %p397
      %p399 = scmp.ne.s32.totalorder %s391, %s394
      %p400 = scmp.eq.s32.totalorder %s31, 0
      %p401 = por %p399, %p400
      %p402 = scmp.ne.s32.totalorder %s391, %s394
      %p403 = scmp.eq.s32.totalorder %s36, 3
      %p404 = por %p402, %p403
      %p405 = scmp.ne.s32.totalorder %s394, %s395
      %p406 = scmp.eq.s32.totalorder %s36, 0
      %p407 = por %p405, %p406
      %p408 = scmp.ne.s32.totalorder %s394, %s395
      %p409 = scmp.eq.s32.totalorder %s37, 3
      %p410 = por %p408, %p409
      %p412 = scmp.ne.s32.totalorder %s395, %s411
      %p413 = scmp.eq.s32.totalorder %s37, 0
      %p414 = por %p412, %p413
      %s416 = sadd.s32 %s415, 1
      %p419 = scmp.eq.s32.totalorder %s31, 3
      %p420 = scmp.ne.s32.totalorder %s415, %s417
      %p421 = scmp.eq.s32.totalorder %s31, 0
      %p422 = por %p420, %p421
      %p423 = scmp.ne.s32.totalorder %s415, %s417
      %p424 = scmp.eq.s32.totalorder %s36, 3
      %p425 = por %p423, %p424
      %p426 = scmp.ne.s32.totalorder %s417, %s418
      %p427 = scmp.eq.s32.totalorder %s36, 0
      %p428 = por %p426, %p427
      %p429 = scmp.ne.s32.totalorder %s417, %s418
      %p430 = scmp.eq.s32.totalorder %s37, 3
      %p431 = por %p429, %p430
      %p433 = scmp.ne.s32.totalorder %s418, %s432
      %p434 = scmp.eq.s32.totalorder %s37, 0
      %p435 = por %p433, %p434
      %s437 = sadd.s32 %s436, 1
      %p440 = scmp.eq.s32.totalorder %s31, 3
      %p441 = scmp.ne.s32.totalorder %s436, %s438
      %p442 = scmp.eq.s32.totalorder %s31, 0
      %p443 = por %p441, %p442
      %p444 = scmp.ne.s32.totalorder %s436, %s438
      %p445 = scmp.eq.s32.totalorder %s36, 3
      %p446 = por %p444, %p445
      %p447 = scmp.ne.s32.totalorder %s438, %s439
      %p448 = scmp.eq.s32.totalorder %s36, 0
      %p449 = por %p447, %p448
      %p450 = scmp.ne.s32.totalorder %s438, %s439
      %p451 = scmp.eq.s32.totalorder %s37, 3
      %p452 = por %p450, %p451
      %p454 = scmp.ne.s32.totalorder %s439, %s453
      %p455 = scmp.eq.s32.totalorder %s37, 0
      %p456 = por %p454, %p455
      %s457 = ssub.s32 %s38, %s50
      %p458 = scmp.eq.s32.totalorder %s457, 0
      %s460 = sadd.s32 %s459, 1
      %s461 = scalar_select %p458, %s459, %s460
      %p464 = pneg %p458
      %p465 = scmp.eq.s32.totalorder %s31, 3
      %p466 = por %p464, %p465
      %p467 = scmp.ne.s32.totalorder %s459, %s462
      %p468 = scmp.eq.s32.totalorder %s31, 0
      %p469 = por %p467, %p468
      %p470 = scmp.ne.s32.totalorder %s459, %s462
      %p471 = scmp.eq.s32.totalorder %s36, 3
      %p472 = por %p470, %p471
      %p473 = scmp.ne.s32.totalorder %s462, %s463
      %p474 = scmp.eq.s32.totalorder %s36, 0
      %p475 = por %p473, %p474
      %p476 = scmp.ne.s32.totalorder %s462, %s463
      %p477 = scmp.eq.s32.totalorder %s37, 3
      %p478 = por %p476, %p477
      %p480 = scmp.ne.s32.totalorder %s463, %s479
      %p481 = scmp.eq.s32.totalorder %s37, 0
      %p482 = por %p480, %p481
      %s483 = ssub.s32 %s38, %s50
      %s484 = ssub.s32 %s39, %s46
      %s485 = sor.u32 %s483, %s484
      %p486 = scmp.eq.s32.totalorder %s485, 0
      %s488 = sadd.s32 %s487, 1
      %s489 = scalar_select %p486, %s487, %s488
      %p492 = pneg %p486
      %p493 = scmp.eq.s32.totalorder %s31, 3
      %p494 = por %p492, %p493
      %p495 = scmp.ne.s32.totalorder %s487, %s490
      %p496 = scmp.eq.s32.totalorder %s31, 0
      %p497 = por %p495, %p496
      %p498 = scmp.ne.s32.totalorder %s487, %s490
      %p499 = scmp.eq.s32.totalorder %s36, 3
      %p500 = por %p498, %p499
      %p501 = scmp.ne.s32.totalorder %s490, %s491
      %p502 = scmp.eq.s32.totalorder %s36, 0
      %p503 = por %p501, %p502
      %p504 = scmp.ne.s32.totalorder %s490, %s491
      %p505 = scmp.eq.s32.totalorder %s37, 3
      %p506 = por %p504, %p505
      %p508 = scmp.ne.s32.totalorder %s491, %s507
      %p509 = scmp.eq.s32.totalorder %s37, 0
      %p510 = por %p508, %p509
      %s511 = ssub.s32 %s38, %s50
      %s512 = ssub.s32 %s39, %s46
      %s513 = sor.u32 %s511, %s512
      %p514 = scmp.eq.s32.totalorder %s513, 0
      %s516 = sadd.s32 %s515, 1
      %s517 = scalar_select %p514, %s515, %s516
      %p520 = pneg %p514
      %p521 = scmp.eq.s32.totalorder %s31, 3
      %p522 = por %p520, %p521
      %p523 = scmp.ne.s32.totalorder %s515, %s518
      %p524 = scmp.eq.s32.totalorder %s31, 0
      %p525 = por %p523, %p524
      %p526 = scmp.ne.s32.totalorder %s515, %s518
      %p527 = scmp.eq.s32.totalorder %s36, 3
      %p528 = por %p526, %p527
      %p529 = scmp.ne.s32.totalorder %s518, %s519
      %p530 = scmp.eq.s32.totalorder %s36, 0
      %p531 = por %p529, %p530
      %p532 = scmp.ne.s32.totalorder %s518, %s519
      %p533 = scmp.eq.s32.totalorder %s37, 3
      %p534 = por %p532, %p533
      %p536 = scmp.ne.s32.totalorder %s519, %s535
      %p537 = scmp.eq.s32.totalorder %s37, 0
      %p538 = por %p536, %p537
      %p539 = scmp.le.s32.totalorder 1, %s31
      %p540 = scmp.lt.s32.totalorder %s31, 5
      %p541 = pnand %p539, %p540
      %p542 = pneg %p541
      // Predicated region
      $region9: #{tpu_custom_call.1} parent=5 // pred_check
        _
      $region10: #{tpu_custom_call.1} parent=5 // pred_check_branch
        %544 = sbr.rel (%p541) target = $region12
      $region11: #{tpu_custom_call.1} parent=5 // pred_region
        %s545 = ssub.s32 %s31, 1
        // Predicated region
        $region13: #{tpu_custom_call.1} parent=11 // pred_check
          %p546 = pneg %p428
        $region14: #{tpu_custom_call.1} parent=11 // pred_check_branch
          %548 = sbr.rel (%p546) target = $region16
        $region15: #{tpu_custom_call.1} parent=11 // pred_region
          _
        $region16: #{tpu_custom_call.1} parent=11 // pred_fallthru
          _
        // Predicated region
        $region17: #{tpu_custom_call.1} parent=11 // pred_check
          %p549 = pneg %p449
        $region18: #{tpu_custom_call.1} parent=11 // pred_check_branch
          %551 = sbr.rel (%p549) target = $region20
        $region19: #{tpu_custom_call.1} parent=11 // pred_region
          _
        $region20: #{tpu_custom_call.1} parent=11 // pred_fallthru
          _
      $region12: #{tpu_custom_call.1} parent=5 // pred_fallthru
        _
      %p552 = scmp.lt.s32.totalorder %s31, 4
      // Predicated region
      $region21: #{tpu_custom_call.1} parent=5 // pred_check
        %p553 = pneg %p552
      $region22: #{tpu_custom_call.1} parent=5 // pred_check_branch
        %555 = sbr.rel (%p553) target = $region24
      $region23: #{tpu_custom_call.1} parent=5 // pred_region
        // Predicated region
        $region25: #{tpu_custom_call.1} parent=23 // pred_check
          %p556 = pneg %p63
        $region26: #{tpu_custom_call.1} parent=23 // pred_check_branch
          %558 = sbr.rel (%p556) target = $region28
        $region27: #{tpu_custom_call.1} parent=23 // pred_region
          %p559 = scmp.lt.s32.totalorder %s38, 1
          %s560 = scalar_select %p559, %s38, 1
          %s561 = smul.addr %s560, 2
          %s562 = smul.addr %s561, 8
          %s563 = scalar_lea.vmem %s0, %s562
        $region28: #{tpu_custom_call.1} parent=23 // pred_fallthru
          _
        // Predicated region
        $region29: #{tpu_custom_call.1} parent=23 // pred_check
          %p564 = pneg %p89
        $region30: #{tpu_custom_call.1} parent=23 // pred_check_branch
          %566 = sbr.rel (%p564) target = $region32
        $region31: #{tpu_custom_call.1} parent=23 // pred_region
          %p567 = scmp.lt.s32.totalorder %s38, 1
          %s568 = scalar_select %p567, %s38, 1
          %s569 = scalar_lea.vmem %s1, %s568
        $region32: #{tpu_custom_call.1} parent=23 // pred_fallthru
          _
        // Predicated region
        $region33: #{tpu_custom_call.1} parent=23 // pred_check
          %p570 = pneg %p115
        $region34: #{tpu_custom_call.1} parent=23 // pred_check_branch
          %572 = sbr.rel (%p570) target = $region36
        $region35: #{tpu_custom_call.1} parent=23 // pred_region
          %p573 = scmp.lt.s32.totalorder %s39, 1
          %s574 = scalar_select %p573, %s39, 1
          %s575 = scalar_lea.vmem %s2, %s574
        $region36: #{tpu_custom_call.1} parent=23 // pred_fallthru
          _
        // Predicated region
        $region37: #{tpu_custom_call.1} parent=23 // pred_check
          %p576 = pneg %p141
        $region38: #{tpu_custom_call.1} parent=23 // pred_check_branch
          %578 = sbr.rel (%p576) target = $region40
        $region39: #{tpu_custom_call.1} parent=23 // pred_region
          %p579 = scmp.lt.s32.totalorder %s39, 1
          %s580 = scalar_select %p579, %s39, 1
          %s581 = scalar_lea.vmem %s3, %s580
        $region40: #{tpu_custom_call.1} parent=23 // pred_fallthru
          _
        // Predicated region
        $region41: #{tpu_custom_call.1} parent=23 // pred_check
          %p582 = pneg %p167
        $region42: #{tpu_custom_call.1} parent=23 // pred_check_branch
          %584 = sbr.rel (%p582) target = $region44
        $region43: #{tpu_custom_call.1} parent=23 // pred_region
          %p585 = scmp.lt.s32.totalorder %s39, 1
          %s586 = scalar_select %p585, %s39, 1
          %s587 = smul.addr %s586, 4
          %s588 = smul.addr %s587, 4
          %s589 = scalar_lea.vmem %s4, %s588
        $region44: #{tpu_custom_call.1} parent=23 // pred_fallthru
          _
        // Predicated region
        $region45: #{tpu_custom_call.1} parent=23 // pred_check
          %p590 = pneg %p193
        $region46: #{tpu_custom_call.1} parent=23 // pred_check_branch
          %592 = sbr.rel (%p590) target = $region48
        $region47: #{tpu_custom_call.1} parent=23 // pred_region
          %p593 = scmp.lt.s32.totalorder %s39, 1
          %s594 = scalar_select %p593, %s39, 1
          %s595 = scalar_lea.vmem %s5, %s594
        $region48: #{tpu_custom_call.1} parent=23 // pred_fallthru
          _
        // Predicated region
        $region49: #{tpu_custom_call.1} parent=23 // pred_check
          %p596 = pneg %p219
        $region50: #{tpu_custom_call.1} parent=23 // pred_check_branch
          %598 = sbr.rel (%p596) target = $region52
        $region51: #{tpu_custom_call.1} parent=23 // pred_region
          %p599 = scmp.lt.s32.totalorder %s39, 1
          %s600 = scalar_select %p599, %s39, 1
          %s601 = smul.addr %s600, 4
          %s602 = smul.addr %s601, 4
          %s603 = scalar_lea.vmem %s6, %s602
        $region52: #{tpu_custom_call.1} parent=23 // pred_fallthru
          _
        // Predicated region
        $region53: #{tpu_custom_call.1} parent=23 // pred_check
          %p604 = pneg %p245
        $region54: #{tpu_custom_call.1} parent=23 // pred_check_branch
          %606 = sbr.rel (%p604) target = $region56
        $region55: #{tpu_custom_call.1} parent=23 // pred_region
          %p607 = scmp.lt.s32.totalorder %s39, 1
          %s608 = scalar_select %p607, %s39, 1
          %s609 = scalar_lea.vmem %s7, %s608
        $region56: #{tpu_custom_call.1} parent=23 // pred_fallthru
          _
        // Predicated region
        $region57: #{tpu_custom_call.1} parent=23 // pred_check
          %p610 = pneg %p271
        $region58: #{tpu_custom_call.1} parent=23 // pred_check_branch
          %612 = sbr.rel (%p610) target = $region60
        $region59: #{tpu_custom_call.1} parent=23 // pred_region
          %p613 = scmp.lt.s32.totalorder %s39, 1
          %s614 = scalar_select %p613, %s39, 1
          %s615 = scalar_lea.vmem %s8, %s614
        $region60: #{tpu_custom_call.1} parent=23 // pred_fallthru
          _
        // Predicated region
        $region61: #{tpu_custom_call.1} parent=23 // pred_check
          %p616 = pneg %p297
        $region62: #{tpu_custom_call.1} parent=23 // pred_check_branch
          %618 = sbr.rel (%p616) target = $region64
        $region63: #{tpu_custom_call.1} parent=23 // pred_region
          %p619 = scmp.lt.s32.totalorder %s39, 1
          %s620 = scalar_select %p619, %s39, 1
          %s621 = scalar_lea.vmem %s9, %s620
        $region64: #{tpu_custom_call.1} parent=23 // pred_fallthru
          _
        // Predicated region
        $region65: #{tpu_custom_call.1} parent=23 // pred_check
          %p622 = pneg %p323
        $region66: #{tpu_custom_call.1} parent=23 // pred_check_branch
          %624 = sbr.rel (%p622) target = $region68
        $region67: #{tpu_custom_call.1} parent=23 // pred_region
          %p625 = scmp.lt.s32.totalorder %s39, 1
          %s626 = scalar_select %p625, %s39, 1
          %s627 = smul.addr %s626, 4
          %s628 = smul.addr %s627, 4
          %s629 = scalar_lea.vmem %s10, %s628
        $region68: #{tpu_custom_call.1} parent=23 // pred_fallthru
          _
        // Predicated region
        $region69: #{tpu_custom_call.1} parent=23 // pred_check
          %p630 = pneg %p349
        $region70: #{tpu_custom_call.1} parent=23 // pred_check_branch
          %632 = sbr.rel (%p630) target = $region72
        $region71: #{tpu_custom_call.1} parent=23 // pred_region
          %p633 = scmp.lt.s32.totalorder %s39, 1
          %s634 = scalar_select %p633, %s39, 1
          %s635 = scalar_lea.vmem %s11, %s634
        $region72: #{tpu_custom_call.1} parent=23 // pred_fallthru
          _
        // Predicated region
        $region73: #{tpu_custom_call.1} parent=23 // pred_check
          %p636 = pneg %p375
        $region74: #{tpu_custom_call.1} parent=23 // pred_check_branch
          %638 = sbr.rel (%p636) target = $region76
        $region75: #{tpu_custom_call.1} parent=23 // pred_region
          %p639 = scmp.lt.s32.totalorder %s39, 1
          %s640 = scalar_select %p639, %s39, 1
          %s641 = smul.addr %s640, 16
          %s642 = smul.addr %s641, 4
          %s643 = scalar_lea.vmem %s12, %s642
        $region76: #{tpu_custom_call.1} parent=23 // pred_fallthru
          _
        // Predicated region
        $region77: #{tpu_custom_call.1} parent=23 // pred_check
          %p644 = pneg %p401
        $region78: #{tpu_custom_call.1} parent=23 // pred_check_branch
          %646 = sbr.rel (%p644) target = $region80
        $region79: #{tpu_custom_call.1} parent=23 // pred_region
          %p647 = scmp.lt.s32.totalorder %s39, 1
          %s648 = scalar_select %p647, %s39, 1
          %s649 = scalar_lea.vmem %s13, %s648
        $region80: #{tpu_custom_call.1} parent=23 // pred_fallthru
          _
      $region24: #{tpu_custom_call.1} parent=5 // pred_fallthru
        _
      %p650 = scmp.le.s32.totalorder 1, %s31
      %p651 = scmp.lt.s32.totalorder %s31, 5
      %p652 = pnand %p650, %p651
      %p653 = pneg %p652
      // Predicated region
      $region81: #{tpu_custom_call.1} parent=5 // pred_check
        _
      $region82: #{tpu_custom_call.1} parent=5 // pred_check_branch
        %655 = sbr.rel (%p652) target = $region84
      $region83: #{tpu_custom_call.1} parent=5 // pred_region
        %s656 = ssub.s32 %s31, 1
        %p657 = scmp.lt.s32.totalorder %s40, 1
        %s658 = scalar_select %p657, %s40, 1
        %s659 = smul.addr %s658, 2
        %s660 = smul.addr %s659, 8
        %s661 = scalar_lea.vmem %s0, %s660
        %p662 = pneg %p69
        %p663 = pneg %p66
        %p664 = scmp.lt.s32.totalorder %s40, 1
        %s665 = scalar_select %p664, %s40, 1
        %s666 = scalar_lea.vmem %s1, %s665
        %p667 = pneg %p95
        %p668 = pneg %p92
        %p669 = scmp.lt.s32.totalorder %s41, 1
        %s670 = scalar_select %p669, %s41, 1
        %s671 = scalar_lea.vmem %s2, %s670
        %p672 = pneg %p121
        %p673 = pneg %p118
        %p674 = scmp.lt.s32.totalorder %s41, 1
        %s675 = scalar_select %p674, %s41, 1
        %s676 = scalar_lea.vmem %s3, %s675
        %p677 = pneg %p147
        %p678 = pneg %p144
        %p679 = scmp.lt.s32.totalorder %s41, 1
        %s680 = scalar_select %p679, %s41, 1
        %s681 = smul.addr %s680, 4
        %s682 = smul.addr %s681, 4
        %s683 = scalar_lea.vmem %s4, %s682
        %p684 = pneg %p173
        %p685 = pneg %p170
        %p686 = scmp.lt.s32.totalorder %s41, 1
        %s687 = scalar_select %p686, %s41, 1
        %s688 = scalar_lea.vmem %s5, %s687
        %p689 = pneg %p199
        %p690 = pneg %p196
        %p691 = scmp.lt.s32.totalorder %s41, 1
        %s692 = scalar_select %p691, %s41, 1
        %s693 = smul.addr %s692, 4
        %s694 = smul.addr %s693, 4
        %s695 = scalar_lea.vmem %s6, %s694
        %p696 = pneg %p225
        %p697 = pneg %p222
        %p698 = scmp.lt.s32.totalorder %s41, 1
        %s699 = scalar_select %p698, %s41, 1
        %s700 = scalar_lea.vmem %s7, %s699
        %p701 = pneg %p251
        %p702 = pneg %p248
        %p703 = scmp.lt.s32.totalorder %s41, 1
        %s704 = scalar_select %p703, %s41, 1
        %s705 = scalar_lea.vmem %s8, %s704
        %p706 = pneg %p277
        %p707 = pneg %p274
        %p708 = scmp.lt.s32.totalorder %s41, 1
        %s709 = scalar_select %p708, %s41, 1
        %s710 = scalar_lea.vmem %s9, %s709
        %p711 = pneg %p303
        %p712 = pneg %p300
        %p713 = scmp.lt.s32.totalorder %s41, 1
        %s714 = scalar_select %p713, %s41, 1
        %s715 = smul.addr %s714, 4
        %s716 = smul.addr %s715, 4
        %s717 = scalar_lea.vmem %s10, %s716
        %p718 = pneg %p329
        %p719 = pneg %p326
        %p720 = scmp.lt.s32.totalorder %s41, 1
        %s721 = scalar_select %p720, %s41, 1
        %s722 = scalar_lea.vmem %s11, %s721
        %p723 = pneg %p355
        %p724 = pneg %p352
        %p725 = scmp.lt.s32.totalorder %s41, 1
        %s726 = scalar_select %p725, %s41, 1
        %s727 = smul.addr %s726, 16
        %s728 = smul.addr %s727, 4
        %s729 = scalar_lea.vmem %s12, %s728
        %p730 = pneg %p381
        %p731 = pneg %p378
        %p732 = scmp.lt.s32.totalorder %s41, 1
        %s733 = scalar_select %p732, %s41, 1
        %s734 = scalar_lea.vmem %s13, %s733
        %p735 = pneg %p407
        %p736 = pneg %p404
        %p737 = pneg %p428
        %p738 = pneg %p425
        %p739 = pneg %p449
        %p740 = pneg %p446
        %p741 = pneg %p475
        %p742 = pneg %p472
        %s743 = sand.u32 %s462, 1
        %s744 = scalar_lea.sflag [#allocation5], %s743
        %s745 = sand.u32 %s462, 1
        %s746 = smul.addr %s745, 16
        %s747 = scalar_lea.vmem [#allocation4], %s746
        %p748 = pneg %p503
        %p749 = pneg %p500
        %s750 = sand.u32 %s36, 1
        %s751 = scalar_lea.sflag [#allocation7], %s750
        %s752 = sand.u32 %s490, 1
        %s753 = smul.addr %s752, 16
        %s754 = scalar_lea.vmem [#allocation6], %s753
        %p755 = pneg %p531
        %p756 = pneg %p528
        %s757 = sand.u32 %s36, 1
        %s758 = scalar_lea.sflag [#allocation7], %s757
        %s759 = sand.u32 %s518, 1
        %s760 = smul.addr %s759, 16
        %s761 = scalar_lea.vmem [#allocation8], %s760
        %p762 = scmp.lt.s32.totalorder %s40, 1
        %s763 = scalar_select %p762, %s40, 1
        %s764 = smul.addr %s763, 2
        %s765 = smul.addr %s764, 8
        %s766 = scalar_lea.vmem %s0, %s765
        %p767 = scmp.lt.s32.totalorder %s40, 1
        %s768 = scalar_select %p767, %s40, 1
        %s769 = scalar_lea.vmem %s1, %s768
        %p770 = scmp.lt.s32.totalorder %s41, 1
        %s771 = scalar_select %p770, %s41, 1
        %s772 = scalar_lea.vmem %s2, %s771
        %p773 = scmp.lt.s32.totalorder %s41, 1
        %s774 = scalar_select %p773, %s41, 1
        %s775 = scalar_lea.vmem %s3, %s774
        %p776 = scmp.lt.s32.totalorder %s41, 1
        %s777 = scalar_select %p776, %s41, 1
        %s778 = smul.addr %s777, 4
        %s779 = smul.addr %s778, 4
        %s780 = scalar_lea.vmem %s4, %s779
        %p781 = scmp.lt.s32.totalorder %s41, 1
        %s782 = scalar_select %p781, %s41, 1
        %s783 = scalar_lea.vmem %s5, %s782
        %p784 = scmp.lt.s32.totalorder %s41, 1
        %s785 = scalar_select %p784, %s41, 1
        %s786 = smul.addr %s785, 4
        %s787 = smul.addr %s786, 4
        %s788 = scalar_lea.vmem %s6, %s787
        %p789 = scmp.lt.s32.totalorder %s41, 1
        %s790 = scalar_select %p789, %s41, 1
        %s791 = scalar_lea.vmem %s7, %s790
        %p792 = scmp.lt.s32.totalorder %s41, 1
        %s793 = scalar_select %p792, %s41, 1
        %s794 = scalar_lea.vmem %s8, %s793
        %p795 = scmp.lt.s32.totalorder %s41, 1
        %s796 = scalar_select %p795, %s41, 1
        %s797 = scalar_lea.vmem %s9, %s796
        %p798 = scmp.lt.s32.totalorder %s41, 1
        %s799 = scalar_select %p798, %s41, 1
        %s800 = smul.addr %s799, 4
        %s801 = smul.addr %s800, 4
        %s802 = scalar_lea.vmem %s10, %s801
        %p803 = scmp.lt.s32.totalorder %s41, 1
        %s804 = scalar_select %p803, %s41, 1
        %s805 = scalar_lea.vmem %s11, %s804
        %p806 = scmp.lt.s32.totalorder %s41, 1
        %s807 = scalar_select %p806, %s41, 1
        %s808 = smul.addr %s807, 16
        %s809 = smul.addr %s808, 4
        %s810 = scalar_lea.vmem %s12, %s809
        %p811 = scmp.lt.s32.totalorder %s41, 1
        %s812 = scalar_select %p811, %s41, 1
        %s813 = scalar_lea.vmem %s13, %s812
        %p815 = scmp.eq.s32.totalorder %s41, 0
        // Predicated region
        $region85: #{tpu_custom_call.1} parent=83 // pred_check
          %p816 = pneg %p815
        $region86: #{tpu_custom_call.1} parent=83 // pred_check_branch
          %818 = sbr.rel (%p816) target = $region88
        $region87: #{tpu_custom_call.1} parent=83 // pred_region
          %v819 = vld [vmem:[%s766] sm:$0xff]
          %v820 = vld [vmem:[%s766 + $0x8] sm:$0xff]
          %vm821 = vcmask 261120
          %822 = vst.msk [vmem:[#allocation2] sm:$0xff] %vm821, %v819
          %823 = vst.msk [vmem:[#allocation2 + $0x8] sm:$0xff] %vm821, %v820
          %v824 = vlaneseq
          %v825 = vshrl.u32 %v824, 7
          %v826 = vadd.s32 %v825, 8
          %v827 = vlaneseq
          %v828 = vand.u32 %v827, 127
          %vm829 = vcmp.le.s32.totalorder %v828, %v825
          %vm830 = vcmp.le.s32.totalorder %v828, %v826
          %v831 = vsel %vm829, 0.0, -1e+09
          %v832 = vsel %vm830, 0.0, -1e+09
          %v833 = vld [vmem:[%s769] sm:$0x1]
          %v835 = vlaneseq
          %v836 = vshrl.u32 %v835, 7
          %v837 = vsub.s32 0, %v836
          %v838 = vrot.slane %v833, %v837
          %v840 = vadd.f32 %v831, %v838
          %v841 = vadd.f32 %v832, %v838
          %vm842 = vcmask 130048
          %843 = vst.msk [vmem:[#allocation3] sm:$0xff] %vm842, %v840
          %844 = vst.msk [vmem:[#allocation3 + $0x8] sm:$0xff] %vm842, %v841
        $region88: #{tpu_custom_call.1} parent=83 // pred_fallthru
          _
        %v845 = vld [vmem:[#allocation2] sm:$0xff]
        %v846 = vld [vmem:[#allocation2 + $0x8] sm:$0xff]
        %v847 = vld [vmem:[%s772] sm:$0x1]
        %v848 = vld [vmem:[%s775] sm:$0x1]
        %vm849 = vcmask 261120
        %v850 = vsel %vm849, %v845, 0.0
        %851 = vadd.xlane.f32.xlu0 %v850
        %v852 = vpop.xlane.xlu0 %851
        %v853 = vsel %vm849, %v846, 0.0
        %854 = vadd.xlane.f32.xlu0 %v853
        %v855 = vpop.xlane.xlu0 %854
        %v856 = vrcp.pop 32.0
        %v857 = vmul.f32 %v852, %v856
        %v858 = vmul.f32 %v855, %v856
        %v859 = vsub.f32 %v845, %v857
        %v860 = vsub.f32 %v846, %v858
        %v861 = vmul.f32 %v859, %v859
        %v862 = vmul.f32 %v860, %v860
        %v863 = vsel %vm849, %v861, 0.0
        %864 = vadd.xlane.f32.xlu0 %v863
        %v865 = vpop.xlane.xlu0 %864
        %v866 = vsel %vm849, %v862, 0.0
        %867 = vadd.xlane.f32.xlu0 %v866
        %v868 = vpop.xlane.xlu0 %867
        %v869 = vmul.f32 %v865, %v856
        %v870 = vmul.f32 %v868, %v856
        %v871 = vadd.f32 %v869, 1e-05
        %v872 = vadd.f32 %v870, 1e-05
        %v873 = vrsqrt.pop %v871
        %v874 = vrsqrt.pop %v872
        %v875 = vmul.f32 %v859, %v873
        %v876 = vmul.f32 %v860, %v874
        %v878 = vlaneseq
        %v879 = vshrl.u32 %v878, 7
        %v880 = vsub.s32 0, %v879
        %v881 = vrot.slane %v847, %v880
        %v883 = vmul.f32 %v875, %v881
        %v884 = vmul.f32 %v876, %v881
        %v886 = vlaneseq
        %v887 = vshrl.u32 %v886, 7
        %v888 = vsub.s32 0, %v887
        %v889 = vrot.slane %v848, %v888
        %v891 = vadd.f32 %v883, %v889
        %v892 = vadd.f32 %v884, %v889
        %v893 = vpack.c.bf16 %v892, %v891
        %v894 = vld [vmem:[%s780] sm:$0xf]
        %v895 = vld [vmem:[%s780 + $0x4] sm:$0xf]
        %v896 = vld [vmem:[%s780 + $0x8] sm:$0xf]
        %v897 = vld [vmem:[%s780 + $0xc] sm:$0xf]
        %v898 = vld [vmem:[%s783] sm:$0x1]
        %v900 = vlaneseq
        %v901 = vshrl.u32 %v900, 7
        %v902 = vsub.s32 0, %v901
        %v903 = vrot.slane %v898, %v902
        %v909 = vunpack.c.l.b16 %v894
        %v910 = vunpack.c.l.b16 %v895
        %v911 = vunpack.c.l.b16 %v896
        %v912 = vunpack.c.l.b16 %v897
        %v913 = vpack.c.b16 %v910, %v909
        %v914 = vpack.c.b16 %v912, %v911
        %v918 = vsel %vm849, %v893, 0
        %920 = vmatprep.subr.bf16.mxu0 0
        %921 = vmatpush1.bf16.msra.mxu0 %v913
        %922 = vmatprep.subr.bf16.mxu0 0
        %923 = vmatpush1.bf16.msra.mxu0 %v914
        %924 = vmatprep.subr.bf16.mxu0 0
        %925 = vmatpush1.bf16.msra.mxu0 0
        %926 = vmatprep.subr.bf16.mxu0 0
        %927 = vmatpush1.bf16.msra.mxu0 0
        %928 = vmatprep.subr.bf16.mxu0 0
        %929 = vmatpush1.bf16.msra.mxu0 0
        %930 = vmatprep.subr.bf16.mxu0 0
        %931 = vmatpush1.bf16.msra.mxu0 0
        %932 = vmatprep.subr.bf16.mxu0 0
        %933 = vmatpush1.bf16.msra.mxu0 0
        %934 = vmatprep.subr.bf16.mxu0 0
        %935 = vmatpush1.bf16.msra.mxu0 0
        %936 = vmatprep.subr.bf16.mxu0 0
        %937 = vmatpush1.bf16.msra.mxu0 0
        %938 = vmatprep.subr.bf16.mxu0 0
        %939 = vmatpush1.bf16.msra.mxu0 0
        %940 = vmatprep.subr.bf16.mxu0 0
        %941 = vmatpush1.bf16.msra.mxu0 0
        %942 = vmatprep.subr.bf16.mxu0 0
        %943 = vmatpush1.bf16.msra.mxu0 0
        %944 = vmatprep.subr.bf16.mxu0 0
        %945 = vmatpush1.bf16.msra.mxu0 0
        %946 = vmatprep.subr.bf16.mxu0 0
        %947 = vmatpush1.bf16.msra.mxu0 0
        %948 = vmatprep.subr.bf16.mxu0 0
        %949 = vmatpush1.bf16.msra.mxu0 0
        %950 = vmatprep.subr.bf16.mxu0 0
        %951 = vmatpush1.bf16.msra.mxu0 0
        %952 = vmatprep.mubr.bf16.mxu0 0
        %953 = vmatmul.mubr.bf16.gmra.mrb[0].mxu0 %v918
        %v954 = vpop.f32.mrb[0].mxu0
        %v955 = vadd.f32 %v903, %v954
        %v956 = vpop.f32.mrb[0].mxu0
        %v957 = vpop.f32.mrb[0].mxu0
        %v958 = vadd.f32 %v903, %v957
        %v959 = vpop.f32.mrb[0].mxu0
        %960 = vdwg.mxu0
        %963 = vrot.lane.b32.xlu0 %v955, 96
        %v964 = vpop.permute.xlu0 %963
        %965 = vrot.lane.b32.xlu0 %v958, 96
        %v966 = vpop.permute.xlu0 %965
        %969 = vst.msk [vmem:[%s754] sm:$0xff] %vm849, %v964
        %970 = vst.msk [vmem:[%s754 + $0x8] sm:$0xff] %vm849, %v966
        %971 = vrot.lane.b32.xlu0 %v955, 64
        %v972 = vpop.permute.xlu0 %971
        %973 = vrot.lane.b32.xlu0 %v958, 64
        %v974 = vpop.permute.xlu0 %973
        %977 = vst.msk [vmem:[%s761] sm:$0xff] %vm849, %v972
        %978 = vst.msk [vmem:[%s761 + $0x8] sm:$0xff] %vm849, %v974
        %979 = vrot.lane.b32.xlu0 %v955, 112
        %v980 = vpop.permute.xlu0 %979
        %981 = vrot.lane.b32.xlu0 %v958, 112
        %v982 = vpop.permute.xlu0 %981
        %v985 = vcombine.high %v955, 0.0
        %v987 = vunpack.c.l.s4 1983009808
        %v988 = vunpack.c.0.s8 %v987
        %v989 = vlaneseq
        %v990 = vshrl.u32 %v989, 7
        %v991 = vsub.s32 %v988, %v990
        %v992 = vrot.slane %v955, %v991
        %v994 = vunpack.c.l.s4 1983009808
        %v995 = vunpack.c.0.s8 %v994
        %v996 = vlaneseq
        %v997 = vshrl.u32 %v996, 7
        %v998 = vsub.s32 %v995, %v997
        %v999 = vrot.slane %v985, %v998
        %v1000 = vcombine.high %v980, 0.0
        %v1002 = vunpack.c.l.s4 1983009808
        %v1003 = vunpack.c.0.s8 %v1002
        %v1004 = vlaneseq
        %v1005 = vshrl.u32 %v1004, 7
        %v1006 = vsub.s32 %v1003, %v1005
        %v1007 = vrot.slane %v980, %v1006
        %v1009 = vunpack.c.l.s4 1983009808
        %v1010 = vunpack.c.0.s8 %v1009
        %v1011 = vlaneseq
        %v1012 = vshrl.u32 %v1011, 7
        %v1013 = vsub.s32 %v1010, %v1012
        %v1014 = vrot.slane %v1000, %v1013
        %v1015 = vcombine.low %v992, %v1007
        %v1016 = vcombine.high %v992, %v1007
        %v1018 = vunpack.c.l.s4 1934713408
        %v1019 = vunpack.c.0.s8 %v1018
        %v1020 = vlaneseq
        %v1021 = vshrl.u32 %v1020, 7
        %v1022 = vsub.s32 %v1019, %v1021
        %v1023 = vrot.slane %v1015, %v1022
        %v1025 = vunpack.c.l.s4 1934713408
        %v1026 = vunpack.c.0.s8 %v1025
        %v1027 = vlaneseq
        %v1028 = vshrl.u32 %v1027, 7
        %v1029 = vsub.s32 %v1026, %v1028
        %v1030 = vrot.slane %v1016, %v1029
        %v1031 = vcombine.low %v999, %v1014
        %v1032 = vcombine.high %v999, %v1014
        %v1034 = vunpack.c.l.s4 1934713408
        %v1035 = vunpack.c.0.s8 %v1034
        %v1036 = vlaneseq
        %v1037 = vshrl.u32 %v1036, 7
        %v1038 = vsub.s32 %v1035, %v1037
        %v1039 = vrot.slane %v1031, %v1038
        %v1041 = vunpack.c.l.s4 1934713408
        %v1042 = vunpack.c.0.s8 %v1041
        %v1043 = vlaneseq
        %v1044 = vshrl.u32 %v1043, 7
        %v1045 = vsub.s32 %v1042, %v1044
        %v1046 = vrot.slane %v1032, %v1045
        %v1047 = vcombine.high %v1023, 0.0
        %v1048 = vcombine.high %v1030, 0.0
        %v1049 = vcombine.high %v1039, 0.0
        %v1050 = vcombine.high %v1046, 0.0
        %v1051 = vcombine.high %v958, 0.0
        %v1053 = vunpack.c.l.s4 1983009808
        %v1054 = vunpack.c.0.s8 %v1053
        %v1055 = vlaneseq
        %v1056 = vshrl.u32 %v1055, 7
        %v1057 = vsub.s32 %v1054, %v1056
        %v1058 = vrot.slane %v958, %v1057
        %v1060 = vunpack.c.l.s4 1983009808
        %v1061 = vunpack.c.0.s8 %v1060
        %v1062 = vlaneseq
        %v1063 = vshrl.u32 %v1062, 7
        %v1064 = vsub.s32 %v1061, %v1063
        %v1065 = vrot.slane %v1051, %v1064
        %v1066 = vcombine.high %v982, 0.0
        %v1068 = vunpack.c.l.s4 1983009808
        %v1069 = vunpack.c.0.s8 %v1068
        %v1070 = vlaneseq
        %v1071 = vshrl.u32 %v1070, 7
        %v1072 = vsub.s32 %v1069, %v1071
        %v1073 = vrot.slane %v982, %v1072
        %v1075 = vunpack.c.l.s4 1983009808
        %v1076 = vunpack.c.0.s8 %v1075
        %v1077 = vlaneseq
        %v1078 = vshrl.u32 %v1077, 7
        %v1079 = vsub.s32 %v1076, %v1078
        %v1080 = vrot.slane %v1066, %v1079
        %v1081 = vcombine.low %v1058, %v1073
        %v1082 = vcombine.high %v1058, %v1073
        %v1084 = vunpack.c.l.s4 1934713408
        %v1085 = vunpack.c.0.s8 %v1084
        %v1086 = vlaneseq
        %v1087 = vshrl.u32 %v1086, 7
        %v1088 = vsub.s32 %v1085, %v1087
        %v1089 = vrot.slane %v1081, %v1088
        %v1091 = vunpack.c.l.s4 1934713408
        %v1092 = vunpack.c.0.s8 %v1091
        %v1093 = vlaneseq
        %v1094 = vshrl.u32 %v1093, 7
        %v1095 = vsub.s32 %v1092, %v1094
        %v1096 = vrot.slane %v1082, %v1095
        %v1097 = vcombine.low %v1065, %v1080
        %v1098 = vcombine.high %v1065, %v1080
        %v1100 = vunpack.c.l.s4 1934713408
        %v1101 = vunpack.c.0.s8 %v1100
        %v1102 = vlaneseq
        %v1103 = vshrl.u32 %v1102, 7
        %v1104 = vsub.s32 %v1101, %v1103
        %v1105 = vrot.slane %v1097, %v1104
        %v1107 = vunpack.c.l.s4 1934713408
        %v1108 = vunpack.c.0.s8 %v1107
        %v1109 = vlaneseq
        %v1110 = vshrl.u32 %v1109, 7
        %v1111 = vsub.s32 %v1108, %v1110
        %v1112 = vrot.slane %v1098, %v1111
        %v1113 = vcombine.high %v1089, 0.0
        %v1114 = vcombine.high %v1096, 0.0
        %v1115 = vcombine.high %v1105, 0.0
        %v1116 = vcombine.high %v1112, 0.0
        %v1117 = vcombine.low %v1023, %v1030
        %v1119 = vunpack.c.l.s4 1983009808
        %v1120 = vunpack.c.0.s8 %v1119
        %v1121 = vlaneseq
        %v1122 = vshrl.u32 %v1121, 7
        %v1123 = vsub.s32 %v1120, %v1122
        %v1124 = vrot.slane %v1117, %v1123
        %v1125 = vcombine.low %v1047, %v1048
        %v1127 = vunpack.c.l.s4 1983009808
        %v1128 = vunpack.c.0.s8 %v1127
        %v1129 = vlaneseq
        %v1130 = vshrl.u32 %v1129, 7
        %v1131 = vsub.s32 %v1128, %v1130
        %v1132 = vrot.slane %v1125, %v1131
        %v1133 = vcombine.low %v1039, %v1046
        %v1135 = vunpack.c.l.s4 1983009808
        %v1136 = vunpack.c.0.s8 %v1135
        %v1137 = vlaneseq
        %v1138 = vshrl.u32 %v1137, 7
        %v1139 = vsub.s32 %v1136, %v1138
        %v1140 = vrot.slane %v1133, %v1139
        %v1141 = vcombine.low %v1049, %v1050
        %v1143 = vunpack.c.l.s4 1983009808
        %v1144 = vunpack.c.0.s8 %v1143
        %v1145 = vlaneseq
        %v1146 = vshrl.u32 %v1145, 7
        %v1147 = vsub.s32 %v1144, %v1146
        %v1148 = vrot.slane %v1141, %v1147
        %v1149 = vcombine.low %v1124, %v1132
        %v1151 = vunpack.c.l.s4 1934713408
        %v1152 = vunpack.c.0.s8 %v1151
        %v1153 = vlaneseq
        %v1154 = vshrl.u32 %v1153, 7
        %v1155 = vsub.s32 %v1152, %v1154
        %v1156 = vrot.slane %v1149, %v1155
        %v1157 = vcombine.low %v1140, %v1148
        %v1159 = vunpack.c.l.s4 1934713408
        %v1160 = vunpack.c.0.s8 %v1159
        %v1161 = vlaneseq
        %v1162 = vshrl.u32 %v1161, 7
        %v1163 = vsub.s32 %v1160, %v1162
        %v1164 = vrot.slane %v1157, %v1163
        %v1165 = vcombine.low %v1156, %v1164
        %v1166 = vcombine.high %v1156, %v1164
        %v1167 = vcombine.low %v1089, %v1096
        %v1169 = vunpack.c.l.s4 1983009808
        %v1170 = vunpack.c.0.s8 %v1169
        %v1171 = vlaneseq
        %v1172 = vshrl.u32 %v1171, 7
        %v1173 = vsub.s32 %v1170, %v1172
        %v1174 = vrot.slane %v1167, %v1173
        %v1175 = vcombine.low %v1113, %v1114
        %v1177 = vunpack.c.l.s4 1983009808
        %v1178 = vunpack.c.0.s8 %v1177
        %v1179 = vlaneseq
        %v1180 = vshrl.u32 %v1179, 7
        %v1181 = vsub.s32 %v1178, %v1180
        %v1182 = vrot.slane %v1175, %v1181
        %v1183 = vcombine.low %v1105, %v1112
        %v1185 = vunpack.c.l.s4 1983009808
        %v1186 = vunpack.c.0.s8 %v1185
        %v1187 = vlaneseq
        %v1188 = vshrl.u32 %v1187, 7
        %v1189 = vsub.s32 %v1186, %v1188
        %v1190 = vrot.slane %v1183, %v1189
        %v1191 = vcombine.low %v1115, %v1116
        %v1193 = vunpack.c.l.s4 1983009808
        %v1194 = vunpack.c.0.s8 %v1193
        %v1195 = vlaneseq
        %v1196 = vshrl.u32 %v1195, 7
        %v1197 = vsub.s32 %v1194, %v1196
        %v1198 = vrot.slane %v1191, %v1197
        %v1199 = vcombine.low %v1174, %v1182
        %v1201 = vunpack.c.l.s4 1934713408
        %v1202 = vunpack.c.0.s8 %v1201
        %v1203 = vlaneseq
        %v1204 = vshrl.u32 %v1203, 7
        %v1205 = vsub.s32 %v1202, %v1204
        %v1206 = vrot.slane %v1199, %v1205
        %v1207 = vcombine.low %v1190, %v1198
        %v1209 = vunpack.c.l.s4 1934713408
        %v1210 = vunpack.c.0.s8 %v1209
        %v1211 = vlaneseq
        %v1212 = vshrl.u32 %v1211, 7
        %v1213 = vsub.s32 %v1210, %v1212
        %v1214 = vrot.slane %v1207, %v1213
        %v1215 = vcombine.low %v1206, %v1214
        %v1216 = vcombine.high %v1206, %v1214
        %v1217 = vpack.c.bf16 %v1215, %v1165
        %v1218 = vpack.c.bf16 %v1216, %v1166
        %1219 = vrot.lane.b32.xlu0 %v980, 96
        %v1220 = vpop.permute.xlu0 %1219
        %1221 = vrot.lane.b32.xlu0 %v982, 96
        %v1222 = vpop.permute.xlu0 %1221
        %v1225 = vcombine.high %v964, 0.0
        %v1227 = vunpack.c.l.s4 1983009808
        %v1228 = vunpack.c.0.s8 %v1227
        %v1229 = vlaneseq
        %v1230 = vshrl.u32 %v1229, 7
        %v1231 = vsub.s32 %v1228, %v1230
        %v1232 = vrot.slane %v964, %v1231
        %v1234 = vunpack.c.l.s4 1983009808
        %v1235 = vunpack.c.0.s8 %v1234
        %v1236 = vlaneseq
        %v1237 = vshrl.u32 %v1236, 7
        %v1238 = vsub.s32 %v1235, %v1237
        %v1239 = vrot.slane %v1225, %v1238
        %v1240 = vcombine.high %v1220, 0.0
        %v1242 = vunpack.c.l.s4 1983009808
        %v1243 = vunpack.c.0.s8 %v1242
        %v1244 = vlaneseq
        %v1245 = vshrl.u32 %v1244, 7
        %v1246 = vsub.s32 %v1243, %v1245
        %v1247 = vrot.slane %v1220, %v1246
        %v1249 = vunpack.c.l.s4 1983009808
        %v1250 = vunpack.c.0.s8 %v1249
        %v1251 = vlaneseq
        %v1252 = vshrl.u32 %v1251, 7
        %v1253 = vsub.s32 %v1250, %v1252
        %v1254 = vrot.slane %v1240, %v1253
        %v1255 = vcombine.low %v1232, %v1247
        %v1256 = vcombine.high %v1232, %v1247
        %v1258 = vunpack.c.l.s4 1934713408
        %v1259 = vunpack.c.0.s8 %v1258
        %v1260 = vlaneseq
        %v1261 = vshrl.u32 %v1260, 7
        %v1262 = vsub.s32 %v1259, %v1261
        %v1263 = vrot.slane %v1255, %v1262
        %v1265 = vunpack.c.l.s4 1934713408
        %v1266 = vunpack.c.0.s8 %v1265
        %v1267 = vlaneseq
        %v1268 = vshrl.u32 %v1267, 7
        %v1269 = vsub.s32 %v1266, %v1268
        %v1270 = vrot.slane %v1256, %v1269
        %v1271 = vcombine.low %v1239, %v1254
        %v1272 = vcombine.high %v1239, %v1254
        %v1274 = vunpack.c.l.s4 1934713408
        %v1275 = vunpack.c.0.s8 %v1274
        %v1276 = vlaneseq
        %v1277 = vshrl.u32 %v1276, 7
        %v1278 = vsub.s32 %v1275, %v1277
        %v1279 = vrot.slane %v1271, %v1278
        %v1281 = vunpack.c.l.s4 1934713408
        %v1282 = vunpack.c.0.s8 %v1281
        %v1283 = vlaneseq
        %v1284 = vshrl.u32 %v1283, 7
        %v1285 = vsub.s32 %v1282, %v1284
        %v1286 = vrot.slane %v1272, %v1285
        %v1287 = vcombine.high %v1263, 0.0
        %v1288 = vcombine.high %v1270, 0.0
        %v1289 = vcombine.high %v1279, 0.0
        %v1290 = vcombine.high %v1286, 0.0
        %v1291 = vcombine.high %v966, 0.0
        %v1293 = vunpack.c.l.s4 1983009808
        %v1294 = vunpack.c.0.s8 %v1293
        %v1295 = vlaneseq
        %v1296 = vshrl.u32 %v1295, 7
        %v1297 = vsub.s32 %v1294, %v1296
        %v1298 = vrot.slane %v966, %v1297
        %v1300 = vunpack.c.l.s4 1983009808
        %v1301 = vunpack.c.0.s8 %v1300
        %v1302 = vlaneseq
        %v1303 = vshrl.u32 %v1302, 7
        %v1304 = vsub.s32 %v1301, %v1303
        %v1305 = vrot.slane %v1291, %v1304
        %v1306 = vcombine.high %v1222, 0.0
        %v1308 = vunpack.c.l.s4 1983009808
        %v1309 = vunpack.c.0.s8 %v1308
        %v1310 = vlaneseq
        %v1311 = vshrl.u32 %v1310, 7
        %v1312 = vsub.s32 %v1309, %v1311
        %v1313 = vrot.slane %v1222, %v1312
        %v1315 = vunpack.c.l.s4 1983009808
        %v1316 = vunpack.c.0.s8 %v1315
        %v1317 = vlaneseq
        %v1318 = vshrl.u32 %v1317, 7
        %v1319 = vsub.s32 %v1316, %v1318
        %v1320 = vrot.slane %v1306, %v1319
        %v1321 = vcombine.low %v1298, %v1313
        %v1322 = vcombine.high %v1298, %v1313
        %v1324 = vunpack.c.l.s4 1934713408
        %v1325 = vunpack.c.0.s8 %v1324
        %v1326 = vlaneseq
        %v1327 = vshrl.u32 %v1326, 7
        %v1328 = vsub.s32 %v1325, %v1327
        %v1329 = vrot.slane %v1321, %v1328
        %v1331 = vunpack.c.l.s4 1934713408
        %v1332 = vunpack.c.0.s8 %v1331
        %v1333 = vlaneseq
        %v1334 = vshrl.u32 %v1333, 7
        %v1335 = vsub.s32 %v1332, %v1334
        %v1336 = vrot.slane %v1322, %v1335
        %v1337 = vcombine.low %v1305, %v1320
        %v1338 = vcombine.high %v1305, %v1320
        %v1340 = vunpack.c.l.s4 1934713408
        %v1341 = vunpack.c.0.s8 %v1340
        %v1342 = vlaneseq
        %v1343 = vshrl.u32 %v1342, 7
        %v1344 = vsub.s32 %v1341, %v1343
        %v1345 = vrot.slane %v1337, %v1344
        %v1347 = vunpack.c.l.s4 1934713408
        %v1348 = vunpack.c.0.s8 %v1347
        %v1349 = vlaneseq
        %v1350 = vshrl.u32 %v1349, 7
        %v1351 = vsub.s32 %v1348, %v1350
        %v1352 = vrot.slane %v1338, %v1351
        %v1353 = vcombine.high %v1329, 0.0
        %v1354 = vcombine.high %v1336, 0.0
        %v1355 = vcombine.high %v1345, 0.0
        %v1356 = vcombine.high %v1352, 0.0
        %v1357 = vcombine.low %v1263, %v1270
        %v1359 = vunpack.c.l.s4 1983009808
        %v1360 = vunpack.c.0.s8 %v1359
        %v1361 = vlaneseq
        %v1362 = vshrl.u32 %v1361, 7
        %v1363 = vsub.s32 %v1360, %v1362
        %v1364 = vrot.slane %v1357, %v1363
        %v1365 = vcombine.low %v1287, %v1288
        %v1367 = vunpack.c.l.s4 1983009808
        %v1368 = vunpack.c.0.s8 %v1367
        %v1369 = vlaneseq
        %v1370 = vshrl.u32 %v1369, 7
        %v1371 = vsub.s32 %v1368, %v1370
        %v1372 = vrot.slane %v1365, %v1371
        %v1373 = vcombine.low %v1279, %v1286
        %v1375 = vunpack.c.l.s4 1983009808
        %v1376 = vunpack.c.0.s8 %v1375
        %v1377 = vlaneseq
        %v1378 = vshrl.u32 %v1377, 7
        %v1379 = vsub.s32 %v1376, %v1378
        %v1380 = vrot.slane %v1373, %v1379
        %v1381 = vcombine.low %v1289, %v1290
        %v1383 = vunpack.c.l.s4 1983009808
        %v1384 = vunpack.c.0.s8 %v1383
        %v1385 = vlaneseq
        %v1386 = vshrl.u32 %v1385, 7
        %v1387 = vsub.s32 %v1384, %v1386
        %v1388 = vrot.slane %v1381, %v1387
        %v1389 = vcombine.low %v1364, %v1372
        %v1391 = vunpack.c.l.s4 1934713408
        %v1392 = vunpack.c.0.s8 %v1391
        %v1393 = vlaneseq
        %v1394 = vshrl.u32 %v1393, 7
        %v1395 = vsub.s32 %v1392, %v1394
        %v1396 = vrot.slane %v1389, %v1395
        %v1397 = vcombine.low %v1380, %v1388
        %v1399 = vunpack.c.l.s4 1934713408
        %v1400 = vunpack.c.0.s8 %v1399
        %v1401 = vlaneseq
        %v1402 = vshrl.u32 %v1401, 7
        %v1403 = vsub.s32 %v1400, %v1402
        %v1404 = vrot.slane %v1397, %v1403
        %v1405 = vcombine.low %v1396, %v1404
        %v1406 = vcombine.high %v1396, %v1404
        %v1407 = vcombine.low %v1329, %v1336
        %v1409 = vunpack.c.l.s4 1983009808
        %v1410 = vunpack.c.0.s8 %v1409
        %v1411 = vlaneseq
        %v1412 = vshrl.u32 %v1411, 7
        %v1413 = vsub.s32 %v1410, %v1412
        %v1414 = vrot.slane %v1407, %v1413
        %v1415 = vcombine.low %v1353, %v1354
        %v1417 = vunpack.c.l.s4 1983009808
        %v1418 = vunpack.c.0.s8 %v1417
        %v1419 = vlaneseq
        %v1420 = vshrl.u32 %v1419, 7
        %v1421 = vsub.s32 %v1418, %v1420
        %v1422 = vrot.slane %v1415, %v1421
        %v1423 = vcombine.low %v1345, %v1352
        %v1425 = vunpack.c.l.s4 1983009808
        %v1426 = vunpack.c.0.s8 %v1425
        %v1427 = vlaneseq
        %v1428 = vshrl.u32 %v1427, 7
        %v1429 = vsub.s32 %v1426, %v1428
        %v1430 = vrot.slane %v1423, %v1429
        %v1431 = vcombine.low %v1355, %v1356
        %v1433 = vunpack.c.l.s4 1983009808
        %v1434 = vunpack.c.0.s8 %v1433
        %v1435 = vlaneseq
        %v1436 = vshrl.u32 %v1435, 7
        %v1437 = vsub.s32 %v1434, %v1436
        %v1438 = vrot.slane %v1431, %v1437
        %v1439 = vcombine.low %v1414, %v1422
        %v1441 = vunpack.c.l.s4 1934713408
        %v1442 = vunpack.c.0.s8 %v1441
        %v1443 = vlaneseq
        %v1444 = vshrl.u32 %v1443, 7
        %v1445 = vsub.s32 %v1442, %v1444
        %v1446 = vrot.slane %v1439, %v1445
        %v1447 = vcombine.low %v1430, %v1438
        %v1449 = vunpack.c.l.s4 1934713408
        %v1450 = vunpack.c.0.s8 %v1449
        %v1451 = vlaneseq
        %v1452 = vshrl.u32 %v1451, 7
        %v1453 = vsub.s32 %v1450, %v1452
        %v1454 = vrot.slane %v1447, %v1453
        %v1455 = vcombine.low %v1446, %v1454
        %v1456 = vcombine.high %v1446, %v1454
        %v1457 = vpack.c.bf16 %v1455, %v1405
        %v1458 = vpack.c.bf16 %v1456, %v1406
        %1459 = vrot.lane.b32.xlu0 %v980, 64
        %v1460 = vpop.permute.xlu0 %1459
        %1461 = vrot.lane.b32.xlu0 %v982, 64
        %v1462 = vpop.permute.xlu0 %1461
        %v1465 = vcombine.high %v972, 0.0
        %v1467 = vunpack.c.l.s4 1983009808
        %v1468 = vunpack.c.0.s8 %v1467
        %v1469 = vlaneseq
        %v1470 = vshrl.u32 %v1469, 7
        %v1471 = vsub.s32 %v1468, %v1470
        %v1472 = vrot.slane %v972, %v1471
        %v1474 = vunpack.c.l.s4 1983009808
        %v1475 = vunpack.c.0.s8 %v1474
        %v1476 = vlaneseq
        %v1477 = vshrl.u32 %v1476, 7
        %v1478 = vsub.s32 %v1475, %v1477
        %v1479 = vrot.slane %v1465, %v1478
        %v1480 = vcombine.high %v1460, 0.0
        %v1482 = vunpack.c.l.s4 1983009808
        %v1483 = vunpack.c.0.s8 %v1482
        %v1484 = vlaneseq
        %v1485 = vshrl.u32 %v1484, 7
        %v1486 = vsub.s32 %v1483, %v1485
        %v1487 = vrot.slane %v1460, %v1486
        %v1489 = vunpack.c.l.s4 1983009808
        %v1490 = vunpack.c.0.s8 %v1489
        %v1491 = vlaneseq
        %v1492 = vshrl.u32 %v1491, 7
        %v1493 = vsub.s32 %v1490, %v1492
        %v1494 = vrot.slane %v1480, %v1493
        %v1495 = vcombine.low %v1472, %v1487
        %v1496 = vcombine.high %v1472, %v1487
        %v1498 = vunpack.c.l.s4 1934713408
        %v1499 = vunpack.c.0.s8 %v1498
        %v1500 = vlaneseq
        %v1501 = vshrl.u32 %v1500, 7
        %v1502 = vsub.s32 %v1499, %v1501
        %v1503 = vrot.slane %v1495, %v1502
        %v1505 = vunpack.c.l.s4 1934713408
        %v1506 = vunpack.c.0.s8 %v1505
        %v1507 = vlaneseq
        %v1508 = vshrl.u32 %v1507, 7
        %v1509 = vsub.s32 %v1506, %v1508
        %v1510 = vrot.slane %v1496, %v1509
        %v1511 = vcombine.low %v1479, %v1494
        %v1512 = vcombine.high %v1479, %v1494
        %v1514 = vunpack.c.l.s4 1934713408
        %v1515 = vunpack.c.0.s8 %v1514
        %v1516 = vlaneseq
        %v1517 = vshrl.u32 %v1516, 7
        %v1518 = vsub.s32 %v1515, %v1517
        %v1519 = vrot.slane %v1511, %v1518
        %v1521 = vunpack.c.l.s4 1934713408
        %v1522 = vunpack.c.0.s8 %v1521
        %v1523 = vlaneseq
        %v1524 = vshrl.u32 %v1523, 7
        %v1525 = vsub.s32 %v1522, %v1524
        %v1526 = vrot.slane %v1512, %v1525
        %v1527 = vcombine.high %v1503, 0.0
        %v1528 = vcombine.high %v1510, 0.0
        %v1529 = vcombine.high %v1519, 0.0
        %v1530 = vcombine.high %v1526, 0.0
        %v1531 = vcombine.high %v974, 0.0
        %v1533 = vunpack.c.l.s4 1983009808
        %v1534 = vunpack.c.0.s8 %v1533
        %v1535 = vlaneseq
        %v1536 = vshrl.u32 %v1535, 7
        %v1537 = vsub.s32 %v1534, %v1536
        %v1538 = vrot.slane %v974, %v1537
        %v1540 = vunpack.c.l.s4 1983009808
        %v1541 = vunpack.c.0.s8 %v1540
        %v1542 = vlaneseq
        %v1543 = vshrl.u32 %v1542, 7
        %v1544 = vsub.s32 %v1541, %v1543
        %v1545 = vrot.slane %v1531, %v1544
        %v1546 = vcombine.high %v1462, 0.0
        %v1548 = vunpack.c.l.s4 1983009808
        %v1549 = vunpack.c.0.s8 %v1548
        %v1550 = vlaneseq
        %v1551 = vshrl.u32 %v1550, 7
        %v1552 = vsub.s32 %v1549, %v1551
        %v1553 = vrot.slane %v1462, %v1552
        %v1555 = vunpack.c.l.s4 1983009808
        %v1556 = vunpack.c.0.s8 %v1555
        %v1557 = vlaneseq
        %v1558 = vshrl.u32 %v1557, 7
        %v1559 = vsub.s32 %v1556, %v1558
        %v1560 = vrot.slane %v1546, %v1559
        %v1561 = vcombine.low %v1538, %v1553
        %v1562 = vcombine.high %v1538, %v1553
        %v1564 = vunpack.c.l.s4 1934713408
        %v1565 = vunpack.c.0.s8 %v1564
        %v1566 = vlaneseq
        %v1567 = vshrl.u32 %v1566, 7
        %v1568 = vsub.s32 %v1565, %v1567
        %v1569 = vrot.slane %v1561, %v1568
        %v1571 = vunpack.c.l.s4 1934713408
        %v1572 = vunpack.c.0.s8 %v1571
        %v1573 = vlaneseq
        %v1574 = vshrl.u32 %v1573, 7
        %v1575 = vsub.s32 %v1572, %v1574
        %v1576 = vrot.slane %v1562, %v1575
        %v1577 = vcombine.low %v1545, %v1560
        %v1578 = vcombine.high %v1545, %v1560
        %v1580 = vunpack.c.l.s4 1934713408
        %v1581 = vunpack.c.0.s8 %v1580
        %v1582 = vlaneseq
        %v1583 = vshrl.u32 %v1582, 7
        %v1584 = vsub.s32 %v1581, %v1583
        %v1585 = vrot.slane %v1577, %v1584
        %v1587 = vunpack.c.l.s4 1934713408
        %v1588 = vunpack.c.0.s8 %v1587
        %v1589 = vlaneseq
        %v1590 = vshrl.u32 %v1589, 7
        %v1591 = vsub.s32 %v1588, %v1590
        %v1592 = vrot.slane %v1578, %v1591
        %v1593 = vcombine.high %v1569, 0.0
        %v1594 = vcombine.high %v1576, 0.0
        %v1595 = vcombine.high %v1585, 0.0
        %v1596 = vcombine.high %v1592, 0.0
        %v1597 = vcombine.low %v1503, %v1510
        %v1599 = vunpack.c.l.s4 1983009808
        %v1600 = vunpack.c.0.s8 %v1599
        %v1601 = vlaneseq
        %v1602 = vshrl.u32 %v1601, 7
        %v1603 = vsub.s32 %v1600, %v1602
        %v1604 = vrot.slane %v1597, %v1603
        %v1605 = vcombine.low %v1527, %v1528
        %v1607 = vunpack.c.l.s4 1983009808
        %v1608 = vunpack.c.0.s8 %v1607
        %v1609 = vlaneseq
        %v1610 = vshrl.u32 %v1609, 7
        %v1611 = vsub.s32 %v1608, %v1610
        %v1612 = vrot.slane %v1605, %v1611
        %v1613 = vcombine.low %v1519, %v1526
        %v1615 = vunpack.c.l.s4 1983009808
        %v1616 = vunpack.c.0.s8 %v1615
        %v1617 = vlaneseq
        %v1618 = vshrl.u32 %v1617, 7
        %v1619 = vsub.s32 %v1616, %v1618
        %v1620 = vrot.slane %v1613, %v1619
        %v1621 = vcombine.low %v1529, %v1530
        %v1623 = vunpack.c.l.s4 1983009808
        %v1624 = vunpack.c.0.s8 %v1623
        %v1625 = vlaneseq
        %v1626 = vshrl.u32 %v1625, 7
        %v1627 = vsub.s32 %v1624, %v1626
        %v1628 = vrot.slane %v1621, %v1627
        %v1629 = vcombine.low %v1604, %v1612
        %v1631 = vunpack.c.l.s4 1934713408
        %v1632 = vunpack.c.0.s8 %v1631
        %v1633 = vlaneseq
        %v1634 = vshrl.u32 %v1633, 7
        %v1635 = vsub.s32 %v1632, %v1634
        %v1636 = vrot.slane %v1629, %v1635
        %v1637 = vcombine.low %v1620, %v1628
        %v1639 = vunpack.c.l.s4 1934713408
        %v1640 = vunpack.c.0.s8 %v1639
        %v1641 = vlaneseq
        %v1642 = vshrl.u32 %v1641, 7
        %v1643 = vsub.s32 %v1640, %v1642
        %v1644 = vrot.slane %v1637, %v1643
        %v1645 = vcombine.low %v1636, %v1644
        %v1646 = vcombine.high %v1636, %v1644
        %v1647 = vcombine.low %v1569, %v1576
        %v1649 = vunpack.c.l.s4 1983009808
        %v1650 = vunpack.c.0.s8 %v1649
        %v1651 = vlaneseq
        %v1652 = vshrl.u32 %v1651, 7
        %v1653 = vsub.s32 %v1650, %v1652
        %v1654 = vrot.slane %v1647, %v1653
        %v1655 = vcombine.low %v1593, %v1594
        %v1657 = vunpack.c.l.s4 1983009808
        %v1658 = vunpack.c.0.s8 %v1657
        %v1659 = vlaneseq
        %v1660 = vshrl.u32 %v1659, 7
        %v1661 = vsub.s32 %v1658, %v1660
        %v1662 = vrot.slane %v1655, %v1661
        %v1663 = vcombine.low %v1585, %v1592
        %v1665 = vunpack.c.l.s4 1983009808
        %v1666 = vunpack.c.0.s8 %v1665
        %v1667 = vlaneseq
        %v1668 = vshrl.u32 %v1667, 7
        %v1669 = vsub.s32 %v1666, %v1668
        %v1670 = vrot.slane %v1663, %v1669
        %v1671 = vcombine.low %v1595, %v1596
        %v1673 = vunpack.c.l.s4 1983009808
        %v1674 = vunpack.c.0.s8 %v1673
        %v1675 = vlaneseq
        %v1676 = vshrl.u32 %v1675, 7
        %v1677 = vsub.s32 %v1674, %v1676
        %v1678 = vrot.slane %v1671, %v1677
        %v1679 = vcombine.low %v1654, %v1662
        %v1681 = vunpack.c.l.s4 1934713408
        %v1682 = vunpack.c.0.s8 %v1681
        %v1683 = vlaneseq
        %v1684 = vshrl.u32 %v1683, 7
        %v1685 = vsub.s32 %v1682, %v1684
        %v1686 = vrot.slane %v1679, %v1685
        %v1687 = vcombine.low %v1670, %v1678
        %v1689 = vunpack.c.l.s4 1934713408
        %v1690 = vunpack.c.0.s8 %v1689
        %v1691 = vlaneseq
        %v1692 = vshrl.u32 %v1691, 7
        %v1693 = vsub.s32 %v1690, %v1692
        %v1694 = vrot.slane %v1687, %v1693
        %v1695 = vcombine.low %v1686, %v1694
        %v1696 = vcombine.high %v1686, %v1694
        %v1697 = vpack.c.bf16 %v1695, %v1645
        %v1698 = vpack.c.bf16 %v1696, %v1646
        %v1699 = vld [vmem:[#allocation3] sm:$0xff]
        %v1700 = vld [vmem:[#allocation3 + $0x8] sm:$0xff]
        %vm1701 = vcmask 130048
        %v1703 = vsel %vm1701, %v1217, 0
        %v1706 = vsel %vm1701, %v1457, 0
        %1708 = vmatprep.subr.bf16.mxu0 0
        %1709 = vmatpush1.bf16.xpose.msra.mxu0 %v1706
        %1710 = vmatprep.subr.bf16.mxu0 0
        %1711 = vmatpush1.bf16.xpose.msra.mxu0 0
        %1712 = vmatprep.subr.bf16.mxu0 0
        %1713 = vmatpush1.bf16.xpose.msra.mxu0 0
        %1714 = vmatprep.subr.bf16.mxu0 0
        %1715 = vmatpush1.bf16.xpose.msra.mxu0 0
        %1716 = vmatprep.subr.bf16.mxu0 0
        %1717 = vmatpush1.bf16.xpose.msra.mxu0 0
        %1718 = vmatprep.subr.bf16.mxu0 0
        %1719 = vmatpush1.bf16.xpose.msra.mxu0 0
        %1720 = vmatprep.subr.bf16.mxu0 0
        %1721 = vmatpush1.bf16.xpose.msra.mxu0 0
        %1722 = vmatprep.subr.bf16.mxu0 0
        %1723 = vmatpush1.bf16.xpose.msra.mxu0 0
        %1724 = vmatprep.subr.bf16.mxu0 0
        %1725 = vmatpush1.bf16.xpose.msra.mxu0 0
        %1726 = vmatprep.subr.bf16.mxu0 0
        %1727 = vmatpush1.bf16.xpose.msra.mxu0 0
        %1728 = vmatprep.subr.bf16.mxu0 0
        %1729 = vmatpush1.bf16.xpose.msra.mxu0 0
        %1730 = vmatprep.subr.bf16.mxu0 0
        %1731 = vmatpush1.bf16.xpose.msra.mxu0 0
        %1732 = vmatprep.subr.bf16.mxu0 0
        %1733 = vmatpush1.bf16.xpose.msra.mxu0 0
        %1734 = vmatprep.subr.bf16.mxu0 0
        %1735 = vmatpush1.bf16.xpose.msra.mxu0 0
        %1736 = vmatprep.subr.bf16.mxu0 0
        %1737 = vmatpush1.bf16.xpose.msra.mxu0 0
        %1738 = vmatprep.subr.bf16.mxu0 0
        %1739 = vmatpush1.bf16.xpose.msra.mxu0 0
        %1740 = vmatprep.mubr.bf16.mxu0 0
        %1741 = vmatmul.mubr.bf16.gmra.mrb[0].mxu0 %v1703
        %v1742 = vpop.f32.mrb[0].mxu0
        %v1743 = vadd.f32 %v1699, %v1742
        %v1744 = vpop.f32.mrb[0].mxu0
        %v1745 = vpop.f32.mrb[0].mxu0
        %v1746 = vadd.f32 %v1700, %v1745
        %v1747 = vpop.f32.mrb[0].mxu0
        %1748 = vdwg.mxu0
        %v1750 = vsel %vm1701, %v1218, 0
        %v1753 = vsel %vm1701, %v1458, 0
        %1755 = vmatprep.subr.bf16.mxu0 0
        %1756 = vmatpush1.bf16.xpose.msra.mxu0 %v1753
        %1757 = vmatprep.subr.bf16.mxu0 0
        %1758 = vmatpush1.bf16.xpose.msra.mxu0 0
        %1759 = vmatprep.subr.bf16.mxu0 0
        %1760 = vmatpush1.bf16.xpose.msra.mxu0 0
        %1761 = vmatprep.subr.bf16.mxu0 0
        %1762 = vmatpush1.bf16.xpose.msra.mxu0 0
        %1763 = vmatprep.subr.bf16.mxu0 0
        %1764 = vmatpush1.bf16.xpose.msra.mxu0 0
        %1765 = vmatprep.subr.bf16.mxu0 0
        %1766 = vmatpush1.bf16.xpose.msra.mxu0 0
        %1767 = vmatprep.subr.bf16.mxu0 0
        %1768 = vmatpush1.bf16.xpose.msra.mxu0 0
        %1769 = vmatprep.subr.bf16.mxu0 0
        %1770 = vmatpush1.bf16.xpose.msra.mxu0 0
        %1771 = vmatprep.subr.bf16.mxu0 0
        %1772 = vmatpush1.bf16.xpose.msra.mxu0 0
        %1773 = vmatprep.subr.bf16.mxu0 0
        %1774 = vmatpush1.bf16.xpose.msra.mxu0 0
        %1775 = vmatprep.subr.bf16.mxu0 0
        %1776 = vmatpush1.bf16.xpose.msra.mxu0 0
        %1777 = vmatprep.subr.bf16.mxu0 0
        %1778 = vmatpush1.bf16.xpose.msra.mxu0 0
        %1779 = vmatprep.subr.bf16.mxu0 0
        %1780 = vmatpush1.bf16.xpose.msra.mxu0 0
        %1781 = vmatprep.subr.bf16.mxu0 0
        %1782 = vmatpush1.bf16.xpose.msra.mxu0 0
        %1783 = vmatprep.subr.bf16.mxu0 0
        %1784 = vmatpush1.bf16.xpose.msra.mxu0 0
        %1785 = vmatprep.subr.bf16.mxu0 0
        %1786 = vmatpush1.bf16.xpose.msra.mxu0 0
        %1787 = vmatprep.mubr.bf16.mxu0 0
        %1788 = vmatmul.mubr.bf16.gmra.mrb[0].mxu0 %v1750
        %v1789 = vpop.f32.mrb[0].mxu0
        %v1790 = vadd.f32 %v1699, %v1789
        %v1791 = vpop.f32.mrb[0].mxu0
        %v1792 = vpop.f32.mrb[0].mxu0
        %v1793 = vadd.f32 %v1700, %v1792
        %v1794 = vpop.f32.mrb[0].mxu0
        %1795 = vdwg.mxu0
        %v1796 = vsel %vm1701, %v1743, -inf
        %1797 = vmax.xlane.f32.xlu0 %v1796
        %v1798 = vpop.xlane.xlu0 %1797
        %v1799 = vsel %vm1701, %v1746, -inf
        %1800 = vmax.xlane.f32.xlu0 %v1799
        %v1801 = vpop.xlane.xlu0 %1800
        %v1802 = vsel %vm1701, %v1790, -inf
        %1803 = vmax.xlane.f32.xlu0 %v1802
        %v1804 = vpop.xlane.xlu0 %1803
        %v1805 = vsel %vm1701, %v1793, -inf
        %1806 = vmax.xlane.f32.xlu0 %v1805
        %v1807 = vpop.xlane.xlu0 %1806
        %v1808 = vsub.f32 %v1743, %v1798
        %v1809 = vsub.f32 %v1746, %v1801
        %v1810 = vsub.f32 %v1790, %v1804
        %v1811 = vsub.f32 %v1793, %v1807
        %v1812 = vmul.f32 %v1808, 1.442695
        %v1813 = vpow.pop %v1812
        %v1814 = vmul.f32 %v1809, 1.442695
        %v1815 = vpow.pop %v1814
        %v1816 = vmul.f32 %v1810, 1.442695
        %v1817 = vpow.pop %v1816
        %v1818 = vmul.f32 %v1811, 1.442695
        %v1819 = vpow.pop %v1818
        %v1820 = vsel %vm1701, %v1813, 0.0
        %1821 = vadd.xlane.f32.xlu0 %v1820
        %v1822 = vpop.xlane.xlu0 %1821
        %v1823 = vsel %vm1701, %v1815, 0.0
        %1824 = vadd.xlane.f32.xlu0 %v1823
        %v1825 = vpop.xlane.xlu0 %1824
        %v1826 = vsel %vm1701, %v1817, 0.0
        %1827 = vadd.xlane.f32.xlu0 %v1826
        %v1828 = vpop.xlane.xlu0 %1827
        %v1829 = vsel %vm1701, %v1819, 0.0
        %1830 = vadd.xlane.f32.xlu0 %v1829
        %v1831 = vpop.xlane.xlu0 %1830
        %v1832 = vrcp.pop %v1822
        %v1833 = vrcp.pop %v1825
        %v1834 = vrcp.pop %v1828
        %v1835 = vrcp.pop %v1831
        %v1836 = vmul.f32 %v1813, %v1832
        %v1837 = vmul.f32 %v1815, %v1833
        %v1838 = vmul.f32 %v1817, %v1834
        %v1839 = vmul.f32 %v1819, %v1835
        %v1840 = vpack.c.bf16 %v1837, %v1836
        %v1841 = vpack.c.bf16 %v1839, %v1838
        %v1843 = vsel %vm1701, %v1840, 0
        %1845 = vmatprep.subr.bf16.mxu0 0
        %1846 = vmatpush1.bf16.msra.mxu0 %v1697
        %1847 = vmatprep.subr.bf16.mxu0 0
        %1848 = vmatpush1.bf16.msra.mxu0 0
        %1849 = vmatprep.subr.bf16.mxu0 0
        %1850 = vmatpush1.bf16.msra.mxu0 0
        %1851 = vmatprep.subr.bf16.mxu0 0
        %1852 = vmatpush1.bf16.msra.mxu0 0
        %1853 = vmatprep.subr.bf16.mxu0 0
        %1854 = vmatpush1.bf16.msra.mxu0 0
        %1855 = vmatprep.subr.bf16.mxu0 0
        %1856 = vmatpush1.bf16.msra.mxu0 0
        %1857 = vmatprep.subr.bf16.mxu0 0
        %1858 = vmatpush1.bf16.msra.mxu0 0
        %1859 = vmatprep.subr.bf16.mxu0 0
        %1860 = vmatpush1.bf16.msra.mxu0 0
        %1861 = vmatprep.subr.bf16.mxu0 0
        %1862 = vmatpush1.bf16.msra.mxu0 0
        %1863 = vmatprep.subr.bf16.mxu0 0
        %1864 = vmatpush1.bf16.msra.mxu0 0
        %1865 = vmatprep.subr.bf16.mxu0 0
        %1866 = vmatpush1.bf16.msra.mxu0 0
        %1867 = vmatprep.subr.bf16.mxu0 0
        %1868 = vmatpush1.bf16.msra.mxu0 0
        %1869 = vmatprep.subr.bf16.mxu0 0
        %1870 = vmatpush1.bf16.msra.mxu0 0
        %1871 = vmatprep.subr.bf16.mxu0 0
        %1872 = vmatpush1.bf16.msra.mxu0 0
        %1873 = vmatprep.subr.bf16.mxu0 0
        %1874 = vmatpush1.bf16.msra.mxu0 0
        %1875 = vmatprep.subr.bf16.mxu0 0
        %1876 = vmatpush1.bf16.msra.mxu0 0
        %1877 = vmatprep.mubr.bf16.mxu0 0
        %1878 = vmatmul.mubr.bf16.gmra.mrb[0].mxu0 %v1843
        %v1879 = vpop.f32.mrb[0].mxu0
        %v1880 = vadd.f32 0.0, %v1879
        %v1881 = vpop.f32.mrb[0].mxu0
        %v1882 = vpop.f32.mrb[0].mxu0
        %v1883 = vadd.f32 0.0, %v1882
        %v1884 = vpop.f32.mrb[0].mxu0
        %1885 = vdwg.mxu0
        %v1887 = vsel %vm1701, %v1841, 0
        %1889 = vmatprep.subr.bf16.mxu0 0
        %1890 = vmatpush1.bf16.msra.mxu0 %v1698
        %1891 = vmatprep.subr.bf16.mxu0 0
        %1892 = vmatpush1.bf16.msra.mxu0 0
        %1893 = vmatprep.subr.bf16.mxu0 0
        %1894 = vmatpush1.bf16.msra.mxu0 0
        %1895 = vmatprep.subr.bf16.mxu0 0
        %1896 = vmatpush1.bf16.msra.mxu0 0
        %1897 = vmatprep.subr.bf16.mxu0 0
        %1898 = vmatpush1.bf16.msra.mxu0 0
        %1899 = vmatprep.subr.bf16.mxu0 0
        %1900 = vmatpush1.bf16.msra.mxu0 0
        %1901 = vmatprep.subr.bf16.mxu0 0
        %1902 = vmatpush1.bf16.msra.mxu0 0
        %1903 = vmatprep.subr.bf16.mxu0 0
        %1904 = vmatpush1.bf16.msra.mxu0 0
        %1905 = vmatprep.subr.bf16.mxu0 0
        %1906 = vmatpush1.bf16.msra.mxu0 0
        %1907 = vmatprep.subr.bf16.mxu0 0
        %1908 = vmatpush1.bf16.msra.mxu0 0
        %1909 = vmatprep.subr.bf16.mxu0 0
        %1910 = vmatpush1.bf16.msra.mxu0 0
        %1911 = vmatprep.subr.bf16.mxu0 0
        %1912 = vmatpush1.bf16.msra.mxu0 0
        %1913 = vmatprep.subr.bf16.mxu0 0
        %1914 = vmatpush1.bf16.msra.mxu0 0
        %1915 = vmatprep.subr.bf16.mxu0 0
        %1916 = vmatpush1.bf16.msra.mxu0 0
        %1917 = vmatprep.subr.bf16.mxu0 0
        %1918 = vmatpush1.bf16.msra.mxu0 0
        %1919 = vmatprep.subr.bf16.mxu0 0
        %1920 = vmatpush1.bf16.msra.mxu0 0
        %1921 = vmatprep.mubr.bf16.mxu0 0
        %1922 = vmatmul.mubr.bf16.gmra.mrb[0].mxu0 %v1887
        %v1923 = vpop.f32.mrb[0].mxu0
        %v1924 = vadd.f32 0.0, %v1923
        %v1925 = vpop.f32.mrb[0].mxu0
        %v1926 = vpop.f32.mrb[0].mxu0
        %v1927 = vadd.f32 0.0, %v1926
        %v1928 = vpop.f32.mrb[0].mxu0
        %1929 = vdwg.mxu0
        %v1930 = vcombine.high %v1880, 0.0
        %v1932 = vunpack.c.l.s4 1983009808
        %v1933 = vunpack.c.0.s8 %v1932
        %v1934 = vlaneseq
        %v1935 = vshrl.u32 %v1934, 7
        %v1936 = vsub.s32 %v1933, %v1935
        %v1937 = vrot.slane %v1880, %v1936
        %v1939 = vunpack.c.l.s4 1983009808
        %v1940 = vunpack.c.0.s8 %v1939
        %v1941 = vlaneseq
        %v1942 = vshrl.u32 %v1941, 7
        %v1943 = vsub.s32 %v1940, %v1942
        %v1944 = vrot.slane %v1930, %v1943
        %v1945 = vcombine.high %v1924, 0.0
        %v1947 = vunpack.c.l.s4 1983009808
        %v1948 = vunpack.c.0.s8 %v1947
        %v1949 = vlaneseq
        %v1950 = vshrl.u32 %v1949, 7
        %v1951 = vsub.s32 %v1948, %v1950
        %v1952 = vrot.slane %v1924, %v1951
        %v1954 = vunpack.c.l.s4 1983009808
        %v1955 = vunpack.c.0.s8 %v1954
        %v1956 = vlaneseq
        %v1957 = vshrl.u32 %v1956, 7
        %v1958 = vsub.s32 %v1955, %v1957
        %v1959 = vrot.slane %v1945, %v1958
        %v1960 = vcombine.low %v1937, %v1952
        %v1961 = vcombine.high %v1937, %v1952
        %v1963 = vunpack.c.l.s4 1934713408
        %v1964 = vunpack.c.0.s8 %v1963
        %v1965 = vlaneseq
        %v1966 = vshrl.u32 %v1965, 7
        %v1967 = vsub.s32 %v1964, %v1966
        %v1968 = vrot.slane %v1960, %v1967
        %v1970 = vunpack.c.l.s4 1934713408
        %v1971 = vunpack.c.0.s8 %v1970
        %v1972 = vlaneseq
        %v1973 = vshrl.u32 %v1972, 7
        %v1974 = vsub.s32 %v1971, %v1973
        %v1975 = vrot.slane %v1961, %v1974
        %v1976 = vcombine.low %v1944, %v1959
        %v1977 = vcombine.high %v1944, %v1959
        %v1979 = vunpack.c.l.s4 1934713408
        %v1980 = vunpack.c.0.s8 %v1979
        %v1981 = vlaneseq
        %v1982 = vshrl.u32 %v1981, 7
        %v1983 = vsub.s32 %v1980, %v1982
        %v1984 = vrot.slane %v1976, %v1983
        %v1986 = vunpack.c.l.s4 1934713408
        %v1987 = vunpack.c.0.s8 %v1986
        %v1988 = vlaneseq
        %v1989 = vshrl.u32 %v1988, 7
        %v1990 = vsub.s32 %v1987, %v1989
        %v1991 = vrot.slane %v1977, %v1990
        %v1992 = vcombine.high %v1968, 0.0
        %v1993 = vcombine.high %v1975, 0.0
        %v1994 = vcombine.high %v1984, 0.0
        %v1995 = vcombine.high %v1991, 0.0
        %v1996 = vcombine.high %v1883, 0.0
        %v1998 = vunpack.c.l.s4 1983009808
        %v1999 = vunpack.c.0.s8 %v1998
        %v2000 = vlaneseq
        %v2001 = vshrl.u32 %v2000, 7
        %v2002 = vsub.s32 %v1999, %v2001
        %v2003 = vrot.slane %v1883, %v2002
        %v2005 = vunpack.c.l.s4 1983009808
        %v2006 = vunpack.c.0.s8 %v2005
        %v2007 = vlaneseq
        %v2008 = vshrl.u32 %v2007, 7
        %v2009 = vsub.s32 %v2006, %v2008
        %v2010 = vrot.slane %v1996, %v2009
        %v2011 = vcombine.high %v1927, 0.0
        %v2013 = vunpack.c.l.s4 1983009808
        %v2014 = vunpack.c.0.s8 %v2013
        %v2015 = vlaneseq
        %v2016 = vshrl.u32 %v2015, 7
        %v2017 = vsub.s32 %v2014, %v2016
        %v2018 = vrot.slane %v1927, %v2017
        %v2020 = vunpack.c.l.s4 1983009808
        %v2021 = vunpack.c.0.s8 %v2020
        %v2022 = vlaneseq
        %v2023 = vshrl.u32 %v2022, 7
        %v2024 = vsub.s32 %v2021, %v2023
        %v2025 = vrot.slane %v2011, %v2024
        %v2026 = vcombine.low %v2003, %v2018
        %v2027 = vcombine.high %v2003, %v2018
        %v2029 = vunpack.c.l.s4 1934713408
        %v2030 = vunpack.c.0.s8 %v2029
        %v2031 = vlaneseq
        %v2032 = vshrl.u32 %v2031, 7
        %v2033 = vsub.s32 %v2030, %v2032
        %v2034 = vrot.slane %v2026, %v2033
        %v2036 = vunpack.c.l.s4 1934713408
        %v2037 = vunpack.c.0.s8 %v2036
        %v2038 = vlaneseq
        %v2039 = vshrl.u32 %v2038, 7
        %v2040 = vsub.s32 %v2037, %v2039
        %v2041 = vrot.slane %v2027, %v2040
        %v2042 = vcombine.low %v2010, %v2025
        %v2043 = vcombine.high %v2010, %v2025
        %v2045 = vunpack.c.l.s4 1934713408
        %v2046 = vunpack.c.0.s8 %v2045
        %v2047 = vlaneseq
        %v2048 = vshrl.u32 %v2047, 7
        %v2049 = vsub.s32 %v2046, %v2048
        %v2050 = vrot.slane %v2042, %v2049
        %v2052 = vunpack.c.l.s4 1934713408
        %v2053 = vunpack.c.0.s8 %v2052
        %v2054 = vlaneseq
        %v2055 = vshrl.u32 %v2054, 7
        %v2056 = vsub.s32 %v2053, %v2055
        %v2057 = vrot.slane %v2043, %v2056
        %v2058 = vcombine.high %v2034, 0.0
        %v2059 = vcombine.high %v2041, 0.0
        %v2060 = vcombine.high %v2050, 0.0
        %v2061 = vcombine.high %v2057, 0.0
        %v2062 = vcombine.low %v1968, %v1975
        %v2064 = vunpack.c.l.s4 1983009808
        %v2065 = vunpack.c.0.s8 %v2064
        %v2066 = vlaneseq
        %v2067 = vshrl.u32 %v2066, 7
        %v2068 = vsub.s32 %v2065, %v2067
        %v2069 = vrot.slane %v2062, %v2068
        %v2070 = vcombine.low %v1992, %v1993
        %v2072 = vunpack.c.l.s4 1983009808
        %v2073 = vunpack.c.0.s8 %v2072
        %v2074 = vlaneseq
        %v2075 = vshrl.u32 %v2074, 7
        %v2076 = vsub.s32 %v2073, %v2075
        %v2077 = vrot.slane %v2070, %v2076
        %v2078 = vcombine.low %v1984, %v1991
        %v2080 = vunpack.c.l.s4 1983009808
        %v2081 = vunpack.c.0.s8 %v2080
        %v2082 = vlaneseq
        %v2083 = vshrl.u32 %v2082, 7
        %v2084 = vsub.s32 %v2081, %v2083
        %v2085 = vrot.slane %v2078, %v2084
        %v2086 = vcombine.low %v1994, %v1995
        %v2088 = vunpack.c.l.s4 1983009808
        %v2089 = vunpack.c.0.s8 %v2088
        %v2090 = vlaneseq
        %v2091 = vshrl.u32 %v2090, 7
        %v2092 = vsub.s32 %v2089, %v2091
        %v2093 = vrot.slane %v2086, %v2092
        %v2094 = vcombine.low %v2069, %v2077
        %v2096 = vunpack.c.l.s4 1934713408
        %v2097 = vunpack.c.0.s8 %v2096
        %v2098 = vlaneseq
        %v2099 = vshrl.u32 %v2098, 7
        %v2100 = vsub.s32 %v2097, %v2099
        %v2101 = vrot.slane %v2094, %v2100
        %v2102 = vcombine.low %v2085, %v2093
        %v2104 = vunpack.c.l.s4 1934713408
        %v2105 = vunpack.c.0.s8 %v2104
        %v2106 = vlaneseq
        %v2107 = vshrl.u32 %v2106, 7
        %v2108 = vsub.s32 %v2105, %v2107
        %v2109 = vrot.slane %v2102, %v2108
        %v2110 = vcombine.low %v2101, %v2109
        %v2111 = vcombine.high %v2101, %v2109
        %v2112 = vcombine.low %v2034, %v2041
        %v2114 = vunpack.c.l.s4 1983009808
        %v2115 = vunpack.c.0.s8 %v2114
        %v2116 = vlaneseq
        %v2117 = vshrl.u32 %v2116, 7
        %v2118 = vsub.s32 %v2115, %v2117
        %v2119 = vrot.slane %v2112, %v2118
        %v2120 = vcombine.low %v2058, %v2059
        %v2122 = vunpack.c.l.s4 1983009808
        %v2123 = vunpack.c.0.s8 %v2122
        %v2124 = vlaneseq
        %v2125 = vshrl.u32 %v2124, 7
        %v2126 = vsub.s32 %v2123, %v2125
        %v2127 = vrot.slane %v2120, %v2126
        %v2128 = vcombine.low %v2050, %v2057
        %v2130 = vunpack.c.l.s4 1983009808
        %v2131 = vunpack.c.0.s8 %v2130
        %v2132 = vlaneseq
        %v2133 = vshrl.u32 %v2132, 7
        %v2134 = vsub.s32 %v2131, %v2133
        %v2135 = vrot.slane %v2128, %v2134
        %v2136 = vcombine.low %v2060, %v2061
        %v2138 = vunpack.c.l.s4 1983009808
        %v2139 = vunpack.c.0.s8 %v2138
        %v2140 = vlaneseq
        %v2141 = vshrl.u32 %v2140, 7
        %v2142 = vsub.s32 %v2139, %v2141
        %v2143 = vrot.slane %v2136, %v2142
        %v2144 = vcombine.low %v2119, %v2127
        %v2146 = vunpack.c.l.s4 1934713408
        %v2147 = vunpack.c.0.s8 %v2146
        %v2148 = vlaneseq
        %v2149 = vshrl.u32 %v2148, 7
        %v2150 = vsub.s32 %v2147, %v2149
        %v2151 = vrot.slane %v2144, %v2150
        %v2152 = vcombine.low %v2135, %v2143
        %v2154 = vunpack.c.l.s4 1934713408
        %v2155 = vunpack.c.0.s8 %v2154
        %v2156 = vlaneseq
        %v2157 = vshrl.u32 %v2156, 7
        %v2158 = vsub.s32 %v2155, %v2157
        %v2159 = vrot.slane %v2152, %v2158
        %v2160 = vcombine.low %v2151, %v2159
        %v2161 = vcombine.high %v2151, %v2159
        %2164 = vrot.lane.b32.xlu0 %v2111, 16
        %v2165 = vpop.permute.xlu0 %2164
        %2166 = vrot.lane.b32.xlu0 %v2161, 16
        %v2167 = vpop.permute.xlu0 %2166
        %v2170 = vsel %vm1701, %v2110, %v2165
        %v2171 = vsel %vm1701, %v2160, %v2167
        %v2172 = vpack.c.bf16 %v2171, %v2170
        %v2173 = vld [vmem:[%s788] sm:$0xf]
        %v2174 = vld [vmem:[%s788 + $0x4] sm:$0xf]
        %v2175 = vld [vmem:[%s788 + $0x8] sm:$0xf]
        %v2176 = vld [vmem:[%s788 + $0xc] sm:$0xf]
        %v2177 = vld [vmem:[%s791] sm:$0x1]
        %v2179 = vlaneseq
        %v2180 = vshrl.u32 %v2179, 7
        %v2181 = vsub.s32 0, %v2180
        %v2182 = vrot.slane %v2177, %v2181
        %v2188 = vunpack.c.l.b16 %v2173
        %v2189 = vunpack.c.l.b16 %v2174
        %v2190 = vunpack.c.l.b16 %v2175
        %v2191 = vunpack.c.l.b16 %v2176
        %v2192 = vpack.c.b16 %v2189, %v2188
        %v2193 = vpack.c.b16 %v2191, %v2190
        %v2197 = vsel %vm849, %v2172, 0
        %2199 = vmatprep.subr.bf16.mxu0 0
        %2200 = vmatpush1.bf16.msra.mxu0 %v2192
        %2201 = vmatprep.subr.bf16.mxu0 0
        %2202 = vmatpush1.bf16.msra.mxu0 %v2193
        %2203 = vmatprep.subr.bf16.mxu0 0
        %2204 = vmatpush1.bf16.msra.mxu0 0
        %2205 = vmatprep.subr.bf16.mxu0 0
        %2206 = vmatpush1.bf16.msra.mxu0 0
        %2207 = vmatprep.subr.bf16.mxu0 0
        %2208 = vmatpush1.bf16.msra.mxu0 0
        %2209 = vmatprep.subr.bf16.mxu0 0
        %2210 = vmatpush1.bf16.msra.mxu0 0
        %2211 = vmatprep.subr.bf16.mxu0 0
        %2212 = vmatpush1.bf16.msra.mxu0 0
        %2213 = vmatprep.subr.bf16.mxu0 0
        %2214 = vmatpush1.bf16.msra.mxu0 0
        %2215 = vmatprep.subr.bf16.mxu0 0
        %2216 = vmatpush1.bf16.msra.mxu0 0
        %2217 = vmatprep.subr.bf16.mxu0 0
        %2218 = vmatpush1.bf16.msra.mxu0 0
        %2219 = vmatprep.subr.bf16.mxu0 0
        %2220 = vmatpush1.bf16.msra.mxu0 0
        %2221 = vmatprep.subr.bf16.mxu0 0
        %2222 = vmatpush1.bf16.msra.mxu0 0
        %2223 = vmatprep.subr.bf16.mxu0 0
        %2224 = vmatpush1.bf16.msra.mxu0 0
        %2225 = vmatprep.subr.bf16.mxu0 0
        %2226 = vmatpush1.bf16.msra.mxu0 0
        %2227 = vmatprep.subr.bf16.mxu0 0
        %2228 = vmatpush1.bf16.msra.mxu0 0
        %2229 = vmatprep.subr.bf16.mxu0 0
        %2230 = vmatpush1.bf16.msra.mxu0 0
        %2231 = vmatprep.mubr.bf16.mxu0 0
        %2232 = vmatmul.mubr.bf16.gmra.mrb[0].mxu0 %v2197
        %v2233 = vpop.f32.mrb[0].mxu0
        %v2234 = vadd.f32 %v2182, %v2233
        %v2235 = vpop.f32.mrb[0].mxu0
        %v2236 = vpop.f32.mrb[0].mxu0
        %v2237 = vadd.f32 %v2182, %v2236
        %v2238 = vpop.f32.mrb[0].mxu0
        %2239 = vdwg.mxu0
        %v2240 = vadd.f32 %v845, %v2234
        %v2241 = vadd.f32 %v846, %v2237
        %v2242 = vld [vmem:[%s794] sm:$0x1]
        %v2243 = vld [vmem:[%s797] sm:$0x1]
        %v2244 = vsel %vm849, %v2240, 0.0
        %2245 = vadd.xlane.f32.xlu0 %v2244
        %v2246 = vpop.xlane.xlu0 %2245
        %v2247 = vsel %vm849, %v2241, 0.0
        %2248 = vadd.xlane.f32.xlu0 %v2247
        %v2249 = vpop.xlane.xlu0 %2248
        %v2250 = vmul.f32 %v2246, %v856
        %v2251 = vmul.f32 %v2249, %v856
        %v2252 = vsub.f32 %v2240, %v2250
        %v2253 = vsub.f32 %v2241, %v2251
        %v2254 = vmul.f32 %v2252, %v2252
        %v2255 = vmul.f32 %v2253, %v2253
        %v2256 = vsel %vm849, %v2254, 0.0
        %2257 = vadd.xlane.f32.xlu0 %v2256
        %v2258 = vpop.xlane.xlu0 %2257
        %v2259 = vsel %vm849, %v2255, 0.0
        %2260 = vadd.xlane.f32.xlu0 %v2259
        %v2261 = vpop.xlane.xlu0 %2260
        %v2262 = vmul.f32 %v2258, %v856
        %v2263 = vmul.f32 %v2261, %v856
        %v2264 = vadd.f32 %v2262, 1e-05
        %v2265 = vadd.f32 %v2263, 1e-05
        %v2266 = vrsqrt.pop %v2264
        %v2267 = vrsqrt.pop %v2265
        %v2268 = vmul.f32 %v2252, %v2266
        %v2269 = vmul.f32 %v2253, %v2267
        %v2271 = vlaneseq
        %v2272 = vshrl.u32 %v2271, 7
        %v2273 = vsub.s32 0, %v2272
        %v2274 = vrot.slane %v2242, %v2273
        %v2276 = vmul.f32 %v2268, %v2274
        %v2277 = vmul.f32 %v2269, %v2274
        %v2279 = vlaneseq
        %v2280 = vshrl.u32 %v2279, 7
        %v2281 = vsub.s32 0, %v2280
        %v2282 = vrot.slane %v2243, %v2281
        %v2284 = vadd.f32 %v2276, %v2282
        %v2285 = vadd.f32 %v2277, %v2282
        %v2286 = vpack.c.bf16 %v2285, %v2284
        %v2287 = vld [vmem:[%s802] sm:$0xf]
        %v2288 = vld [vmem:[%s802 + $0x4] sm:$0xf]
        %v2289 = vld [vmem:[%s802 + $0x8] sm:$0xf]
        %v2290 = vld [vmem:[%s802 + $0xc] sm:$0xf]
        %v2291 = vld [vmem:[%s805] sm:$0x1]
        %v2293 = vlaneseq
        %v2294 = vshrl.u32 %v2293, 7
        %v2295 = vsub.s32 0, %v2294
        %v2296 = vrot.slane %v2291, %v2295
        %v2302 = vunpack.c.l.b16 %v2287
        %v2303 = vunpack.c.l.b16 %v2288
        %v2304 = vunpack.c.l.b16 %v2289
        %v2305 = vunpack.c.l.b16 %v2290
        %v2306 = vpack.c.b16 %v2303, %v2302
        %v2307 = vpack.c.b16 %v2305, %v2304
        %v2311 = vsel %vm849, %v2286, 0
        %2313 = vmatprep.subr.bf16.mxu0 0
        %2314 = vmatpush1.bf16.msra.mxu0 %v2306
        %2315 = vmatprep.subr.bf16.mxu0 0
        %2316 = vmatpush1.bf16.msra.mxu0 %v2307
        %2317 = vmatprep.subr.bf16.mxu0 0
        %2318 = vmatpush1.bf16.msra.mxu0 0
        %2319 = vmatprep.subr.bf16.mxu0 0
        %2320 = vmatpush1.bf16.msra.mxu0 0
        %2321 = vmatprep.subr.bf16.mxu0 0
        %2322 = vmatpush1.bf16.msra.mxu0 0
        %2323 = vmatprep.subr.bf16.mxu0 0
        %2324 = vmatpush1.bf16.msra.mxu0 0
        %2325 = vmatprep.subr.bf16.mxu0 0
        %2326 = vmatpush1.bf16.msra.mxu0 0
        %2327 = vmatprep.subr.bf16.mxu0 0
        %2328 = vmatpush1.bf16.msra.mxu0 0
        %2329 = vmatprep.subr.bf16.mxu0 0
        %2330 = vmatpush1.bf16.msra.mxu0 0
        %2331 = vmatprep.subr.bf16.mxu0 0
        %2332 = vmatpush1.bf16.msra.mxu0 0
        %2333 = vmatprep.subr.bf16.mxu0 0
        %2334 = vmatpush1.bf16.msra.mxu0 0
        %2335 = vmatprep.subr.bf16.mxu0 0
        %2336 = vmatpush1.bf16.msra.mxu0 0
        %2337 = vmatprep.subr.bf16.mxu0 0
        %2338 = vmatpush1.bf16.msra.mxu0 0
        %2339 = vmatprep.subr.bf16.mxu0 0
        %2340 = vmatpush1.bf16.msra.mxu0 0
        %2341 = vmatprep.subr.bf16.mxu0 0
        %2342 = vmatpush1.bf16.msra.mxu0 0
        %2343 = vmatprep.subr.bf16.mxu0 0
        %2344 = vmatpush1.bf16.msra.mxu0 0
        %2345 = vmatprep.mubr.bf16.mxu0 0
        %2346 = vmatmul.mubr.bf16.gmra.mrb[0].mxu0 %v2311
        %v2347 = vpop.f32.mrb[0].mxu0
        %v2348 = vadd.f32 %v2296, %v2347
        %v2349 = vpop.f32.mrb[0].mxu0
        %v2350 = vpop.f32.mrb[0].mxu0
        %v2351 = vadd.f32 %v2296, %v2350
        %v2352 = vpop.f32.mrb[0].mxu0
        %2353 = vdwg.mxu0
        %v2354 = vmul.f32 %v2348, 0.5
        %v2355 = vmul.f32 %v2351, 0.5
        %v2356 = vmul.f32 %v2348, 0.044715
        %v2357 = vmul.f32 %v2351, 0.044715
        %v2358 = vmul.f32 %v2356, %v2348
        %v2359 = vmul.f32 %v2357, %v2351
        %v2360 = vmul.f32 %v2358, %v2348
        %v2361 = vmul.f32 %v2359, %v2351
        %v2362 = vadd.f32 %v2348, %v2360
        %v2363 = vadd.f32 %v2351, %v2361
        %v2364 = vmul.f32 %v2362, 0.7978846
        %v2365 = vmul.f32 %v2363, 0.7978846
        %v2366 = vtanh.pop %v2364
        %v2367 = vtanh.pop %v2365
        %v2368 = vadd.f32 %v2366, 1.0
        %v2369 = vadd.f32 %v2367, 1.0
        %v2370 = vmul.f32 %v2354, %v2368
        %v2371 = vmul.f32 %v2355, %v2369
        %v2372 = vpack.c.bf16 %v2371, %v2370
        %v2373 = vld [vmem:[%s810] sm:$0xf]
        %v2374 = vld [vmem:[%s810 + $0x4] sm:$0xf]
        %v2375 = vld [vmem:[%s810 + $0x8] sm:$0xf]
        %v2376 = vld [vmem:[%s810 + $0xc] sm:$0xf]
        %v2377 = vld [vmem:[%s810 + $0x10] sm:$0xf]
        %v2378 = vld [vmem:[%s810 + $0x14] sm:$0xf]
        %v2379 = vld [vmem:[%s810 + $0x18] sm:$0xf]
        %v2380 = vld [vmem:[%s810 + $0x1c] sm:$0xf]
        %v2381 = vld [vmem:[%s810 + $0x20] sm:$0xf]
        %v2382 = vld [vmem:[%s810 + $0x24] sm:$0xf]
        %v2383 = vld [vmem:[%s810 + $0x28] sm:$0xf]
        %v2384 = vld [vmem:[%s810 + $0x2c] sm:$0xf]
        %v2385 = vld [vmem:[%s810 + $0x30] sm:$0xf]
        %v2386 = vld [vmem:[%s810 + $0x34] sm:$0xf]
        %v2387 = vld [vmem:[%s810 + $0x38] sm:$0xf]
        %v2388 = vld [vmem:[%s810 + $0x3c] sm:$0xf]
        %v2389 = vld [vmem:[%s813] sm:$0x1]
        %v2391 = vlaneseq
        %v2392 = vshrl.u32 %v2391, 7
        %v2393 = vsub.s32 0, %v2392
        %v2394 = vrot.slane %v2389, %v2393
        %v2412 = vunpack.c.l.b16 %v2373
        %v2413 = vunpack.c.l.b16 %v2374
        %v2414 = vunpack.c.l.b16 %v2375
        %v2415 = vunpack.c.l.b16 %v2376
        %v2416 = vunpack.c.l.b16 %v2377
        %v2417 = vunpack.c.l.b16 %v2378
        %v2418 = vunpack.c.l.b16 %v2379
        %v2419 = vunpack.c.l.b16 %v2380
        %v2420 = vunpack.c.l.b16 %v2381
        %v2421 = vunpack.c.l.b16 %v2382
        %v2422 = vunpack.c.l.b16 %v2383
        %v2423 = vunpack.c.l.b16 %v2384
        %v2424 = vunpack.c.l.b16 %v2385
        %v2425 = vunpack.c.l.b16 %v2386
        %v2426 = vunpack.c.l.b16 %v2387
        %v2427 = vunpack.c.l.b16 %v2388
        %v2428 = vpack.c.b16 %v2413, %v2412
        %v2429 = vpack.c.b16 %v2415, %v2414
        %v2430 = vpack.c.b16 %v2417, %v2416
        %v2431 = vpack.c.b16 %v2419, %v2418
        %v2432 = vpack.c.b16 %v2421, %v2420
        %v2433 = vpack.c.b16 %v2423, %v2422
        %v2434 = vpack.c.b16 %v2425, %v2424
        %v2435 = vpack.c.b16 %v2427, %v2426
        %2444 = vmatprep.subr.bf16.mxu0 0
        %2445 = vmatpush1.bf16.msra.mxu0 %v2428
        %2446 = vmatprep.subr.bf16.mxu0 0
        %2447 = vmatpush1.bf16.msra.mxu0 %v2429
        %2448 = vmatprep.subr.bf16.mxu0 0
        %2449 = vmatpush1.bf16.msra.mxu0 %v2430
        %2450 = vmatprep.subr.bf16.mxu0 0
        %2451 = vmatpush1.bf16.msra.mxu0 %v2431
        %2452 = vmatprep.subr.bf16.mxu0 0
        %2453 = vmatpush1.bf16.msra.mxu0 %v2432
        %2454 = vmatprep.subr.bf16.mxu0 0
        %2455 = vmatpush1.bf16.msra.mxu0 %v2433
        %2456 = vmatprep.subr.bf16.mxu0 0
        %2457 = vmatpush1.bf16.msra.mxu0 %v2434
        %2458 = vmatprep.subr.bf16.mxu0 0
        %2459 = vmatpush1.bf16.msra.mxu0 %v2435
        %2460 = vmatprep.subr.bf16.mxu0 0
        %2461 = vmatpush1.bf16.msra.mxu0 0
        %2462 = vmatprep.subr.bf16.mxu0 0
        %2463 = vmatpush1.bf16.msra.mxu0 0
        %2464 = vmatprep.subr.bf16.mxu0 0
        %2465 = vmatpush1.bf16.msra.mxu0 0
        %2466 = vmatprep.subr.bf16.mxu0 0
        %2467 = vmatpush1.bf16.msra.mxu0 0
        %2468 = vmatprep.subr.bf16.mxu0 0
        %2469 = vmatpush1.bf16.msra.mxu0 0
        %2470 = vmatprep.subr.bf16.mxu0 0
        %2471 = vmatpush1.bf16.msra.mxu0 0
        %2472 = vmatprep.subr.bf16.mxu0 0
        %2473 = vmatpush1.bf16.msra.mxu0 0
        %2474 = vmatprep.subr.bf16.mxu0 0
        %2475 = vmatpush1.bf16.msra.mxu0 0
        %2476 = vmatprep.mubr.bf16.mxu0 0
        %2477 = vmatmul.mubr.bf16.gmra.mrb[0].mxu0 %v2372
        %v2478 = vpop.f32.mrb[0].mxu0
        %v2479 = vadd.f32 %v2394, %v2478
        %v2480 = vpop.f32.mrb[0].mxu0
        %v2481 = vpop.f32.mrb[0].mxu0
        %v2482 = vadd.f32 %v2394, %v2481
        %v2483 = vpop.f32.mrb[0].mxu0
        %2484 = vdwg.mxu0
        %v2485 = vadd.f32 %v2240, %v2479
        %v2486 = vadd.f32 %v2241, %v2482
        %2487 = vst.msk [vmem:[#allocation2] sm:$0xff] %vm849, %v2485
        %2488 = vst.msk [vmem:[#allocation2 + $0x8] sm:$0xff] %vm849, %v2486
        %p2489 = scmp.eq.s32.totalorder %s41, 1
        // Predicated region
        $region89: #{tpu_custom_call.1} parent=83 // pred_check
          %p2490 = pneg %p2489
        $region90: #{tpu_custom_call.1} parent=83 // pred_check_branch
          %2492 = sbr.rel (%p2490) target = $region92
        $region91: #{tpu_custom_call.1} parent=83 // pred_region
          %v2493 = vld [vmem:[%s14] sm:$0x1]
          %v2494 = vld [vmem:[%s15] sm:$0x1]
          %v2495 = vsel %vm849, %v2485, 0.0
          %2496 = vadd.xlane.f32.xlu0 %v2495
          %v2497 = vpop.xlane.xlu0 %2496
          %v2498 = vsel %vm849, %v2486, 0.0
          %2499 = vadd.xlane.f32.xlu0 %v2498
          %v2500 = vpop.xlane.xlu0 %2499
          %v2501 = vmul.f32 %v2497, %v856
          %v2502 = vmul.f32 %v2500, %v856
          %v2503 = vsub.f32 %v2485, %v2501
          %v2504 = vsub.f32 %v2486, %v2502
          %v2505 = vmul.f32 %v2503, %v2503
          %v2506 = vmul.f32 %v2504, %v2504
          %v2507 = vsel %vm849, %v2505, 0.0
          %2508 = vadd.xlane.f32.xlu0 %v2507
          %v2509 = vpop.xlane.xlu0 %2508
          %v2510 = vsel %vm849, %v2506, 0.0
          %2511 = vadd.xlane.f32.xlu0 %v2510
          %v2512 = vpop.xlane.xlu0 %2511
          %v2513 = vmul.f32 %v2509, %v856
          %v2514 = vmul.f32 %v2512, %v856
          %v2515 = vadd.f32 %v2513, 1e-05
          %v2516 = vadd.f32 %v2514, 1e-05
          %v2517 = vrsqrt.pop %v2515
          %v2518 = vrsqrt.pop %v2516
          %v2519 = vmul.f32 %v2503, %v2517
          %v2520 = vmul.f32 %v2504, %v2518
          %v2522 = vlaneseq
          %v2523 = vshrl.u32 %v2522, 7
          %v2524 = vsub.s32 0, %v2523
          %v2525 = vrot.slane %v2493, %v2524
          %v2527 = vmul.f32 %v2519, %v2525
          %v2528 = vmul.f32 %v2520, %v2525
          %v2530 = vlaneseq
          %v2531 = vshrl.u32 %v2530, 7
          %v2532 = vsub.s32 0, %v2531
          %v2533 = vrot.slane %v2494, %v2532
          %v2535 = vadd.f32 %v2527, %v2533
          %v2536 = vadd.f32 %v2528, %v2533
          %2537 = vst.msk [vmem:[%s747] sm:$0xff] %vm849, %v2535
          %2538 = vst.msk [vmem:[%s747 + $0x8] sm:$0xff] %vm849, %v2536
        $region92: #{tpu_custom_call.1} parent=83 // pred_fallthru
          _
        %s2539 = sand.u32 %s462, 1
        %s2540 = scalar_lea.sflag [#allocation5], %s2539
        %s2541 = sand.u32 %s462, 1
        %s2542 = smul.addr %s2541, 16
        %s2543 = scalar_lea.vmem [#allocation4], %s2542
        %s2544 = sand.u32 %s36, 1
        %s2545 = scalar_lea.sflag [#allocation7], %s2544
        %s2546 = sand.u32 %s490, 1
        %s2547 = smul.addr %s2546, 16
        %s2548 = scalar_lea.vmem [#allocation6], %s2547
        %s2549 = sand.u32 %s36, 1
        %s2550 = scalar_lea.sflag [#allocation7], %s2549
        %s2551 = sand.u32 %s518, 1
        %s2552 = smul.addr %s2551, 16
        %s2553 = scalar_lea.vmem [#allocation8], %s2552
        // Predicated region
        $region93: #{tpu_custom_call.1} parent=83 // pred_check
          %p2554 = pneg %p472
        $region94: #{tpu_custom_call.1} parent=83 // pred_check_branch
          %2556 = sbr.rel (%p2554) target = $region96
        $region95: #{tpu_custom_call.1} parent=83 // pred_region
          %s2558 = ssub.s32 256, 256
          %2559 = vsyncadd %s2540, %s2558
          %s2560 = smul.addr %s40, 2
          %s2561 = smul.addr %s2560, 128
          %s2562 = scalar_lea.hbm %s16, %s2561
          %s2563 = sshll.u32 %s2543, 4
          %s2564 = int_to_ptr.vmem [resolvable:$true] %s2563
          %2569 = dma.vmem_to_hbm [thread:$0]  %s2564, 256, %s2562, %s2540, 128, 128, 8
        $region96: #{tpu_custom_call.1} parent=83 // pred_fallthru
          _
        // Predicated region
        $region97: #{tpu_custom_call.1} parent=83 // pred_check
          %p2570 = pneg %p500
        $region98: #{tpu_custom_call.1} parent=83 // pred_check_branch
          %2572 = sbr.rel (%p2570) target = $region100
        $region99: #{tpu_custom_call.1} parent=83 // pred_region
          %s2574 = ssub.s32 256, 256
          %2575 = vsyncadd %s2545, %s2574
          %s2576 = smul.addr %s41, 2
          %s2577 = smul.addr %s40, 4
          %s2578 = sadd.s32 %s2576, %s2577
          %s2579 = smul.addr %s2578, 128
          %s2580 = scalar_lea.hbm %s17, %s2579
          %s2581 = sshll.u32 %s2548, 4
          %s2582 = int_to_ptr.vmem [resolvable:$true] %s2581
          %2587 = dma.vmem_to_hbm [thread:$0]  %s2582, 256, %s2580, %s2545, 128, 128, 8
        $region100: #{tpu_custom_call.1} parent=83 // pred_fallthru
          _
        // Predicated region
        $region101: #{tpu_custom_call.1} parent=83 // pred_check
          %p2588 = pneg %p528
        $region102: #{tpu_custom_call.1} parent=83 // pred_check_branch
          %2590 = sbr.rel (%p2588) target = $region104
        $region103: #{tpu_custom_call.1} parent=83 // pred_region
          %s2592 = ssub.s32 256, 256
          %2593 = vsyncadd %s2550, %s2592
          %s2594 = smul.addr %s41, 2
          %s2595 = smul.addr %s40, 4
          %s2596 = sadd.s32 %s2594, %s2595
          %s2597 = smul.addr %s2596, 128
          %s2598 = scalar_lea.hbm %s18, %s2597
          %s2599 = sshll.u32 %s2553, 4
          %s2600 = int_to_ptr.vmem [resolvable:$true] %s2599
          %2605 = dma.vmem_to_hbm [thread:$0]  %s2600, 256, %s2598, %s2550, 128, 128, 8
        $region104: #{tpu_custom_call.1} parent=83 // pred_fallthru
          _
      $region84: #{tpu_custom_call.1} parent=5 // pred_fallthru
        _
      %p2606 = scmp.le.s32.totalorder 2, %s31
      // Predicated region
      $region105: #{tpu_custom_call.1} parent=5 // pred_check
        %p2607 = pneg %p2606
      $region106: #{tpu_custom_call.1} parent=5 // pred_check_branch
        %2609 = sbr.rel (%p2607) target = $region108
      $region107: #{tpu_custom_call.1} parent=5 // pred_region
        %s2610 = ssub.s32 %s31, 2
        // Predicated region
        $region109: #{tpu_custom_call.1} parent=107 // pred_check
          %p2611 = pneg %p478
        $region110: #{tpu_custom_call.1} parent=107 // pred_check_branch
          %2613 = sbr.rel (%p2611) target = $region112
        $region111: #{tpu_custom_call.1} parent=107 // pred_region
          %s2614 = sand.u32 %s463, 1
          %s2615 = scalar_lea.sflag [#allocation5], %s2614
          %s2616 = sand.u32 %s463, 1
          %s2617 = smul.addr %s2616, 16
          %s2618 = scalar_lea.vmem [#allocation4], %s2617
          %2619 = dma.done %s2615, 256
        $region112: #{tpu_custom_call.1} parent=107 // pred_fallthru
          _
        // Predicated region
        $region113: #{tpu_custom_call.1} parent=107 // pred_check
          %p2620 = pneg %p506
        $region114: #{tpu_custom_call.1} parent=107 // pred_check_branch
          %2622 = sbr.rel (%p2620) target = $region116
        $region115: #{tpu_custom_call.1} parent=107 // pred_region
          %s2623 = sand.u32 %s37, 1
          %s2624 = scalar_lea.sflag [#allocation7], %s2623
          %s2625 = sand.u32 %s491, 1
          %s2626 = smul.addr %s2625, 16
          %s2627 = scalar_lea.vmem [#allocation6], %s2626
          %2628 = dma.done %s2624, 256
        $region116: #{tpu_custom_call.1} parent=107 // pred_fallthru
          _
        // Predicated region
        $region117: #{tpu_custom_call.1} parent=107 // pred_check
          %p2629 = pneg %p534
        $region118: #{tpu_custom_call.1} parent=107 // pred_check_branch
          %2631 = sbr.rel (%p2629) target = $region120
        $region119: #{tpu_custom_call.1} parent=107 // pred_region
          %s2632 = sand.u32 %s37, 1
          %s2633 = scalar_lea.sflag [#allocation7], %s2632
          %s2634 = sand.u32 %s519, 1
          %s2635 = smul.addr %s2634, 16
          %s2636 = scalar_lea.vmem [#allocation8], %s2635
          %2637 = dma.done %s2633, 256
        $region120: #{tpu_custom_call.1} parent=107 // pred_fallthru
          _
      $region108: #{tpu_custom_call.1} parent=5 // pred_fallthru
        _
    $region6: #{tpu_custom_call.1} parent=1 // loop_footer
      %s35 = sadd.s32 1, %s31
    $region7: #{tpu_custom_call.1} parent=1 // loop_footer_branch
      %30 = sbr.rel target = $region3
    $region8: #{tpu_custom_call.1} parent=1 // loop_exit
      _
    %2638 = vsyncpa [#allocation5], 1
    %s2639 = scalar_lea.sflag [#allocation5], 1
    %2640 = vsyncpa %s2639, 1
    %2641 = vsyncpa [#allocation7], 1
    %s2642 = scalar_lea.sflag [#allocation7], 1
    %2643 = vsyncpa %s2642, 1

</llo_original>
